<compile_context>
chip_gen: v5e
topology: v5e:2x2
jax: 0.10.0
libtpu: 0.0.40
codegen_flags: <defaults>
</compile_context>

<pallas_src>
import numpy as np
import jax
import jax.numpy as jnp
from jax import lax
from jax.experimental import pallas as pl
from jax.experimental.pallas import tpu as pltpu


# -------------------- Kernel 1: conv (single im2col matmul) + bias + ReLU + pool --
def conv_pool_kernel(p_ref, w_ref, b_ref, out_ref):
    # p_ref:   (Mblk, 16) bf16  4x4-window taps per pooled pixel (row = b*196 + hw,
    #                           tap t = 4*r + c of the padded-input 4x4 window)
    # w_ref:   (16, 64)   bf16  expanded conv weight; columns q*16..q*16+15 hold
    #                           pool-position q's 3x3 taps (zeros elsewhere)
    # b_ref:   (1, 16)    f32   conv bias
    # out_ref: (Mblk, 16) bf16  pooled activations (row = b*196 + hw, col = channel)
    s = jnp.dot(p_ref[...], w_ref[...], preferred_element_type=jnp.float32)  # (Mblk, 64)
    m = s[:, 0:16]
    for q in range(1, 4):                 # sequential max keeps VMEM temporaries small
        m = jnp.maximum(m, s[:, q * 16:(q + 1) * 16])
    out_ref[...] = jnp.maximum(m + b_ref[...], 0.0).astype(out_ref.dtype)


# -------------------- Kernel 2: fully connected -----------------------------------
def fc_kernel(x_ref, w_ref, b_ref, out_ref):
    # x_ref: (Bblk, 3136) bf16 (hw-major features), w_ref: (10, 3136) bf16 (same order)
    # out_ref: (Bblk, 10) f32
    out_ref[...] = (
        lax.dot_general(
            x_ref[...], w_ref[...],
            dimension_numbers=(((1,), (1,)), ((), ())),   # x @ w.T (lane-dense rhs)
            preferred_element_type=jnp.float32,
        )
        + b_ref[...]
    )


# -------------------- One-time weight preparation (hoisted out of the jit path) ---
def prepare_params(conv_w, conv_b, fc_w, fc_b):
    """conv_w (16,1,3,3), conv_b (16,), fc_w (10,3136), fc_b (10,) -> kernel params."""
    cw = np.asarray(conv_w, np.float32).reshape(16, 3, 3)        # [ch, dh, dw]
    w16 = np.zeros((16, 64), np.float32)                         # [tap, q*16 + ch]
    for q in range(4):
        a, b_ = divmod(q, 2)                                     # pool position offsets
        for dh in range(3):
            for dw in range(3):
                t = 4 * (a + dh) + (b_ + dw)                     # tap index in 4x4 window
                w16[t, q * 16:(q + 1) * 16] = cw[:, dh, dw]
    conv_w16 = jnp.asarray(w16, jnp.bfloat16)                    # (16, 64)
    conv_b2d = jnp.asarray(np.asarray(conv_b, np.float32).reshape(1, 16))

    # Pooled activations are stored (b*196 + hw, ch) -> flatten gives hw-major features.
    # Reorder the FC weight once to match PyTorch's channel-major flatten.
    fcw = (np.asarray(fc_w, np.float32).reshape(10, 16, 196)
           .transpose(0, 2, 1).reshape(10, 3136))                # [o, hw*16 + ch]
    fc_w_hw = jnp.asarray(fcw, jnp.bfloat16)                     # (10, 3136), lane-dense
    fc_b2d = jnp.asarray(np.asarray(fc_b, np.float32).reshape(1, 10))
    return conv_w16, conv_b2d, fc_w_hw, fc_b2d


# -------------------- Wrapper helpers ---------------------------------------------
def _build_patches(x_pad):
    """x_pad: (B, 30, 30) -> (B*196, 16) with
    patches[b*196 + 14*i + j, 4*r + c] = x_pad[b, 2i + r, 2j + c]  (r,c in 0..3).
    Pure strided slicing/stacking; fused by XLA under the surrounding jit."""
    B = x_pad.shape[0]
    taps = []
    for r in range(4):
        for c in range(4):
            taps.append(x_pad[:, r:r + 28:2, c:c + 28:2])        # (B, 14, 14)
    return jnp.stack(taps, axis=-1).reshape(B * 196, 16)         # (B*196, 16)


def _batch_block(B):
    """Images per grid step (host-side; B is static under jit)."""
    if B <= 32:
        return B          # single grid step; block == full array (no divisibility rule)
    return 32             # even & *196 divisible by 8; ~16 MiB peak/step; >=2 steps


def simple_cnn_forward(x, conv_w16, conv_b2d, fc_w_hw, fc_b2d):
    """x: (B, 1, 28, 28) float32.  Returns logits (B, 10) float32."""
    B = x.shape[0]
    bblk = _batch_block(B)
    b_pad = -(-B // bblk) * bblk
    n_blocks = b_pad // bblk
    mblk = bblk * 196
    m_total = b_pad * 196

    xb = x[:, 0]
    if b_pad != B:
        xb = jnp.pad(xb, ((0, b_pad - B), (0, 0), (0, 0)))
    x_sp = jnp.pad(xb, ((0, 0), (1, 1), (1, 1)))                 # (B_pad, 30, 30)
    patches = _build_patches(x_sp).astype(jnp.bfloat16)          # (B_pad*196, 16)

    ce1 = pl.CostEstimate(
        flops=2 * m_total * 16 * 64,
        transcendentals=0,
        bytes_accessed=m_total * 16 * 2 + 16 * 64 * 2 + 16 * 4 + m_total * 16 * 2,
    )
    pooled = pl.pallas_call(
        conv_pool_kernel,
        out_shape=jax.ShapeDtypeStruct((m_total, 16), jnp.bfloat16),
        grid=(n_blocks,),
        in_specs=[
            pl.BlockSpec((mblk, 16), lambda n: (n, 0)),
            pl.BlockSpec((16, 64), lambda n: (0, 0)),
            pl.BlockSpec((1, 16), lambda n: (0, 0)),
        ],
        out_specs=pl.BlockSpec((mblk, 16), lambda n: (n, 0)),
        compiler_params=pltpu.CompilerParams(
            dimension_semantics=("parallel",),
            vmem_limit_bytes=48 * 1024 * 1024,
        ),
        cost_estimate=ce1,
    )(patches, conv_w16, conv_b2d)

    # (B_pad*196, 16) -> (B_pad, 3136): contiguous view, features in hw-major order.
    flat = pooled.reshape(b_pad, 196 * 16)

    ce2 = pl.CostEstimate(
        flops=2 * b_pad * 3136 * 10,
        transcendentals=0,
        bytes_accessed=b_pad * 3136 * 2 + 10 * 3136 * 2 + 10 * 4 + b_pad * 10 * 4,
    )
    logits = pl.pallas_call(
        fc_kernel,
        out_shape=jax.ShapeDtypeStruct((b_pad, 10), jnp.float32),
        grid=(n_blocks,),
        in_specs=[
            pl.BlockSpec((bblk, 3136), lambda n: (n, 0)),
            pl.BlockSpec((10, 3136), lambda n: (0, 0)),
            pl.BlockSpec((1, 10), lambda n: (0, 0)),
        ],
        out_specs=pl.BlockSpec((bblk, 10), lambda n: (n, 0)),
        compiler_params=pltpu.CompilerParams(dimension_semantics=("parallel",)),
        cost_estimate=ce2,
    )(flat, fc_w_hw, fc_b2d)

    return logits[:B]


# -------------------- Pure-JAX reference (f32, PyTorch semantics) ------------------
def reference_forward(x, conv_w, conv_b, fc_w, fc_b):
    conv = lax.conv_general_dilated(
        x, conv_w, window_strides=(1, 1), padding=((1, 1), (1, 1)),
        dimension_numbers=("NCHW", "OIHW", "NCHW"),
        precision=lax.Precision.HIGHEST,
    ) + conv_b[None, :, None, None]
    relu = jnp.maximum(conv, 0.0)
    pool = lax.reduce_window(
        relu, -jnp.inf, lax.max,
        window_dimensions=(1, 1, 2, 2), window_strides=(1, 1, 2, 2),
        padding="VALID",
    )
    flat = pool.reshape(x.shape[0], -1)
    return jnp.dot(flat, fc_w.T, precision=lax.Precision.HIGHEST) + fc_b


if __name__ == "__main__":
    key = jax.random.PRNGKey(0)
    k1, k2, k3, k4, kx = jax.random.split(key, 5)

    # Deterministic synthetic parameters (shapes from SimpleCNN.__init__).
    conv_w = jax.random.normal(k1, (16, 1, 3, 3), jnp.float32) * 0.1      # Conv2d weight
    conv_b = jax.random.normal(k2, (16,), jnp.float32) * 0.1              # Conv2d bias
    fc_w = jax.random.normal(k3, (10, 16 * 14 * 14), jnp.float32) * 0.02  # Linear weight
    fc_b = jax.random.normal(k4, (10,), jnp.float32) * 0.02               # Linear bias

    # Weight prep hoisted out of the per-call jitted path (done once).
    params = prepare_params(conv_w, conv_b, fc_w, fc_b)
    fwd = jax.jit(simple_cnn_forward)

    # B=2: single-block path; B=40: padded multi-block path (2 grid steps of 32).
    for B in (2, 40):
        x = jax.random.normal(jax.random.fold_in(kx, B), (B, 1, 28, 28), jnp.float32)
        out = jax.block_until_ready(fwd(x, *params))
        ref = reference_forward(x, conv_w, conv_b, fc_w, fc_b)
        assert out.shape == (B, 10)
        # Conv patches / weights and the pooled->FC path are bf16 (f32 accumulation),
        # so compare against the pure f32 reference with a looser tolerance.
        assert jnp.allclose(out, ref, atol=2e-2, rtol=2e-2), f"mismatch vs reference at B={B}"

    print("KERNEL_OK")
</pallas_src>

<mosaic_0001>
module attributes {stable_mosaic.version = 11 : i64} {
  func.func @conv_pool_kernel(%arg0: i32, %arg1: memref<392x16xbf16, #tpu.memory_space<vmem>>, %arg2: memref<16x64xbf16, #tpu.memory_space<vmem>>, %arg3: memref<1x16xf32, #tpu.memory_space<vmem>>, %arg4: memref<392x16xbf16, #tpu.memory_space<vmem>>) attributes {dimension_semantics = [#tpu.dimension_semantics<parallel>], iteration_bounds = array<i64: 1>, scalar_prefetch = 0 : i64, scratch_operands = 0 : i64, tpu.core_type = #tpu.core_type<tc>, window_params = [{transform_indices = @transform_0, window_bounds = array<i64: 392, 16>}, {pipeline_mode = #tpu.pipeline_mode<synchronous>, transform_indices = @transform_1, window_bounds = array<i64: 16, 64>}, {pipeline_mode = #tpu.pipeline_mode<synchronous>, transform_indices = @transform_2, window_bounds = array<i64: 1, 16>}, {transform_indices = @transform_3, window_bounds = array<i64: 392, 16>}]} {
    %c0 = arith.constant 0 : index
    %c0_0 = arith.constant 0 : index
    %0 = vector.load %arg1[%c0, %c0_0] : memref<392x16xbf16, #tpu.memory_space<vmem>>, vector<392x16xbf16>
    %c0_1 = arith.constant 0 : index
    %c0_2 = arith.constant 0 : index
    %1 = vector.load %arg2[%c0_1, %c0_2] : memref<16x64xbf16, #tpu.memory_space<vmem>>, vector<16x64xbf16>
    %cst = arith.constant dense<0.000000e+00> : vector<392x64xf32>
    %2 = tpu.matmul %0, %1, %cst {dimension_numbers = #tpu.dot_dimension_numbers<[1], [0], [0], [1], [0, 0, 1, 1], [], []>} : vector<392x16xbf16>, vector<16x64xbf16>, vector<392x64xf32> -> vector<392x64xf32>
    %3 = vector.extract_strided_slice %2 {offsets = [0, 0], sizes = [392, 16], strides = [1, 1]} : vector<392x64xf32> to vector<392x16xf32>
    %4 = vector.extract_strided_slice %2 {offsets = [0, 16], sizes = [392, 16], strides = [1, 1]} : vector<392x64xf32> to vector<392x16xf32>
    %5 = arith.maximumf %3, %4 : vector<392x16xf32>
    %6 = vector.extract_strided_slice %2 {offsets = [0, 32], sizes = [392, 16], strides = [1, 1]} : vector<392x64xf32> to vector<392x16xf32>
    %7 = arith.maximumf %5, %6 : vector<392x16xf32>
    %8 = vector.extract_strided_slice %2 {offsets = [0, 48], sizes = [392, 16], strides = [1, 1]} : vector<392x64xf32> to vector<392x16xf32>
    %9 = arith.maximumf %7, %8 : vector<392x16xf32>
    %c0_3 = arith.constant 0 : index
    %c0_4 = arith.constant 0 : index
    %10 = vector.load %arg3[%c0_3, %c0_4] : memref<1x16xf32, #tpu.memory_space<vmem>>, vector<1x16xf32>
    %11 = vector.broadcast %10 : vector<1x16xf32> to vector<392x16xf32>
    %12 = arith.addf %9, %11 : vector<392x16xf32>
    %cst_5 = arith.constant 0.000000e+00 : f32
    %13 = vector.broadcast %cst_5 : f32 to vector<392x16xf32>
    %14 = arith.maximumf %12, %13 : vector<392x16xf32>
    %15 = arith.truncf %14 : vector<392x16xf32> to vector<392x16xbf16>
    %c0_6 = arith.constant 0 : index
    %c0_7 = arith.constant 0 : index
    %16 = vector.load %arg4[%c0_6, %c0_7] : memref<392x16xbf16, #tpu.memory_space<vmem>>, vector<392x16xbf16>
    tpu.vector_store %arg4[%c0_6, %c0_7], %15 {strides = array<i32>} : memref<392x16xbf16, #tpu.memory_space<vmem>>, vector<392x16xbf16>,
    return
  }
  func.func @transform_0(%arg0: i32) -> (i32, i32) {
    %c0_i32 = arith.constant 0 : i32
    %c0_i32_0 = arith.constant 0 : i32
    return %arg0, %c0_i32 : i32, i32
  }
  func.func @transform_1(%arg0: i32) -> (i32, i32) {
    %c0_i32 = arith.constant 0 : i32
    %c0_i32_0 = arith.constant 0 : i32
    %c0_i32_1 = arith.constant 0 : i32
    return %c0_i32, %c0_i32_0 : i32, i32
  }
  func.func @transform_2(%arg0: i32) -> (i32, i32) {
    %c0_i32 = arith.constant 0 : i32
    %c0_i32_0 = arith.constant 0 : i32
    %c0_i32_1 = arith.constant 0 : i32
    return %c0_i32, %c0_i32_0 : i32, i32
  }
  func.func @transform_3(%arg0: i32) -> (i32, i32) {
    %c0_i32 = arith.constant 0 : i32
    %c0_i32_0 = arith.constant 0 : i32
    return %arg0, %c0_i32 : i32, i32
  }
}

module attributes {stable_mosaic.version = 11 : i64} {
  func.func @fc_kernel(%arg0: i32, %arg1: memref<2x3136xbf16, #tpu.memory_space<vmem>>, %arg2: memref<10x3136xbf16, #tpu.memory_space<vmem>>, %arg3: memref<1x10xf32, #tpu.memory_space<vmem>>, %arg4: memref<2x10xf32, #tpu.memory_space<vmem>>) attributes {dimension_semantics = [#tpu.dimension_semantics<parallel>], iteration_bounds = array<i64: 1>, scalar_prefetch = 0 : i64, scratch_operands = 0 : i64, tpu.core_type = #tpu.core_type<tc>, window_params = [{transform_indices = @transform_0, window_bounds = array<i64: 2, 3136>}, {pipeline_mode = #tpu.pipeline_mode<synchronous>, transform_indices = @transform_1, window_bounds = array<i64: 10, 3136>}, {pipeline_mode = #tpu.pipeline_mode<synchronous>, transform_indices = @transform_2, window_bounds = array<i64: 1, 10>}, {transform_indices = @transform_3, window_bounds = array<i64: 2, 10>}]} {
    %c0 = arith.constant 0 : index
    %c0_0 = arith.constant 0 : index
    %0 = vector.load %arg1[%c0, %c0_0] : memref<2x3136xbf16, #tpu.memory_space<vmem>>, vector<2x3136xbf16>
    %c0_1 = arith.constant 0 : index
    %c0_2 = arith.constant 0 : index
    %1 = vector.load %arg2[%c0_1, %c0_2] : memref<10x3136xbf16, #tpu.memory_space<vmem>>, vector<10x3136xbf16>
    %cst = arith.constant dense<0.000000e+00> : vector<2x10xf32>
    %2 = tpu.matmul %0, %1, %cst {dimension_numbers = #tpu.dot_dimension_numbers<[1], [1], [0], [0], [0, 0, 1, 0], [], []>} : vector<2x3136xbf16>, vector<10x3136xbf16>, vector<2x10xf32> -> vector<2x10xf32>
    %c0_3 = arith.constant 0 : index
    %c0_4 = arith.constant 0 : index
    %3 = vector.load %arg3[%c0_3, %c0_4] : memref<1x10xf32, #tpu.memory_space<vmem>>, vector<1x10xf32>
    %4 = vector.broadcast %3 : vector<1x10xf32> to vector<2x10xf32>
    %5 = arith.addf %2, %4 : vector<2x10xf32>
    %c0_5 = arith.constant 0 : index
    %c0_6 = arith.constant 0 : index
    %6 = vector.load %arg4[%c0_5, %c0_6] : memref<2x10xf32, #tpu.memory_space<vmem>>, vector<2x10xf32>
    tpu.vector_store %arg4[%c0_5, %c0_6], %5 {strides = array<i32>} : memref<2x10xf32, #tpu.memory_space<vmem>>, vector<2x10xf32>,
    return
  }
  func.func @transform_0(%arg0: i32) -> (i32, i32) {
    %c0_i32 = arith.constant 0 : i32
    %c0_i32_0 = arith.constant 0 : i32
    return %arg0, %c0_i32 : i32, i32
  }
  func.func @transform_1(%arg0: i32) -> (i32, i32) {
    %c0_i32 = arith.constant 0 : i32
    %c0_i32_0 = arith.constant 0 : i32
    %c0_i32_1 = arith.constant 0 : i32
    return %c0_i32, %c0_i32_0 : i32, i32
  }
  func.func @transform_2(%arg0: i32) -> (i32, i32) {
    %c0_i32 = arith.constant 0 : i32
    %c0_i32_0 = arith.constant 0 : i32
    %c0_i32_1 = arith.constant 0 : i32
    return %c0_i32, %c0_i32_0 : i32, i32
  }
  func.func @transform_3(%arg0: i32) -> (i32, i32) {
    %c0_i32 = arith.constant 0 : i32
    %c0_i32_0 = arith.constant 0 : i32
    return %arg0, %c0_i32 : i32, i32
  }
}

</mosaic_0001>

<llo_original>
// kernel: simple_cnn_forward.3
$region0: #{simple_cnn_forward.3}
  #allocation0 [shape = 'u32[]', space=smem, size = 0x4, offset = 0x4, fixed_abs, tag = 'smem constant byte address 0x4 - core index']
  #allocation1 [shape = 'u32[72,128]{1,0:T(1,128)}', space=vmem, size = 0x9000, scoped, tag = 'internal scratch']
  %s0 = inlined_call_operand.vmem [shape: bf16[2,3136], index: 0, kind: input, shape index: {}]
  %s1 = inlined_call_operand.vmem [shape: bf16[10,3136], index: 1, kind: input, shape index: {}]
  %s2 = inlined_call_operand.vmem [shape: f32[1,10], index: 2, kind: input, shape index: {}]
  %s3 = inlined_call_operand.hbm [shape: f32[2,10], index: 3, kind: output, shape index: {}]
  %s4 = sld [smem:[#allocation0]]
  $region22: #{simple_cnn_forward.3} parent=0
    _
  %s6 = ssub.s32 1, %s4
  %s7 = scalar_select 0, %s6, %s4
  $region1: #{simple_cnn_forward.3} parent=0
    #allocation2 [shape = 'u8[1024]{0}', space=vmem, size = 0x400, scoped, tag = 'output window, operand 0, single buffered']
    #allocation3 [shape = 's32[1]{0}', space=sflag, size = 0x4, scoped, tag = 'scoped memory for simple_cnn_forward.3']
    %8 = vsyncpa [#allocation3], 0
    // Predicated region
    $region2: #{simple_cnn_forward.3} parent=1 // pred_check
      _
    $region3: #{simple_cnn_forward.3} parent=1 // pred_check_branch
      %10 = sbr.rel (0) target = $region5
    $region4: #{simple_cnn_forward.3} parent=1 // pred_region
      _
    $region5: #{simple_cnn_forward.3} parent=1 // pred_fallthru
      _
    // Predicated region
    $region6: #{simple_cnn_forward.3} parent=1 // pred_check
      _
    $region7: #{simple_cnn_forward.3} parent=1 // pred_check_branch
      %12 = sbr.rel (0) target = $region9
    $region8: #{simple_cnn_forward.3} parent=1 // pred_region
      _
    $region9: #{simple_cnn_forward.3} parent=1 // pred_fallthru
      _
    // Predicated region
    $region10: #{simple_cnn_forward.3} parent=1 // pred_check
      _
    $region11: #{simple_cnn_forward.3} parent=1 // pred_check_branch
      %14 = sbr.rel (0) target = $region13
    $region12: #{simple_cnn_forward.3} parent=1 // pred_region
      _
    $region13: #{simple_cnn_forward.3} parent=1 // pred_fallthru
      _
    %v16 = vld [vmem:[%s0] sm:$0xff]
    %v17 = vld [vmem:[%s0 + $0x8] sm:$0xff]
    %v18 = vld [vmem:[%s0 + $0x10] sm:$0xff]
    %v19 = vld [vmem:[%s0 + $0x18] sm:$0x1]
    %v20 = vld [vmem:[%s1] sm:$0xff]
    %v21 = vld [vmem:[%s1 + $0x8] sm:$0xff]
    %v22 = vld [vmem:[%s1 + $0x10] sm:$0xff]
    %v23 = vld [vmem:[%s1 + $0x18] sm:$0xff]
    %v24 = vld [vmem:[%s1 + $0x20] sm:$0xff]
    %v25 = vld [vmem:[%s1 + $0x28] sm:$0xff]
    %v26 = vld [vmem:[%s1 + $0x30] sm:$0xff]
    %v27 = vld [vmem:[%s1 + $0x38] sm:$0xff]
    %v28 = vld [vmem:[%s1 + $0x40] sm:$0xff]
    %v29 = vld [vmem:[%s1 + $0x48] sm:$0xff]
    %v30 = vld [vmem:[%s1 + $0x50] sm:$0xff]
    %v31 = vld [vmem:[%s1 + $0x58] sm:$0xff]
    %v32 = vld [vmem:[%s1 + $0x60] sm:$0xf]
    %v33 = vld [vmem:[%s1 + $0x64] sm:$0x11]
    %v34 = vld [vmem:[%s1 + $0x6c] sm:$0x11]
    %v35 = vld [vmem:[%s1 + $0x74] sm:$0x11]
    %v36 = vld [vmem:[%s1 + $0x7c] sm:$0x11]
    %v37 = vld [vmem:[%s1 + $0x84] sm:$0x11]
    %v38 = vld [vmem:[%s1 + $0x8c] sm:$0x11]
    %v39 = vld [vmem:[%s1 + $0x94] sm:$0x11]
    %v40 = vld [vmem:[%s1 + $0x9c] sm:$0x11]
    %v41 = vld [vmem:[%s1 + $0xa4] sm:$0x11]
    %v42 = vld [vmem:[%s1 + $0xac] sm:$0x11]
    %v43 = vld [vmem:[%s1 + $0xb4] sm:$0x11]
    %v44 = vld [vmem:[%s1 + $0xbc] sm:$0x11]
    %v45 = vld [vmem:[%s1 + $0xc4] sm:$0x1]
    %v46 = vld [vmem:[%s2] sm:$0x1]
    %v48 = vperm.slane %v46, 0
    %51 = vst [vmem:[#allocation1] ss:$9 sm:$0xff] %v16
    %v52 = vld [vmem:[#allocation1] sm:$0xff]
    %v53 = vld [vmem:[#allocation1 + $0x9] sm:$0xff]
    %v54 = vld [vmem:[#allocation1 + $0x12] sm:$0xff]
    %v55 = vld [vmem:[#allocation1 + $0x1b] sm:$0xff]
    %v56 = vld [vmem:[#allocation1 + $0x24] sm:$0xff]
    %v57 = vld [vmem:[#allocation1 + $0x2d] sm:$0xff]
    %v58 = vld [vmem:[#allocation1 + $0x36] sm:$0xff]
    %v59 = vld [vmem:[#allocation1 + $0x3f] sm:$0xff]
    %61 = vst [vmem:[#allocation1] ss:$9 sm:$0xff] %v17
    %v62 = vld [vmem:[#allocation1] sm:$0xff]
    %v63 = vld [vmem:[#allocation1 + $0x9] sm:$0xff]
    %v64 = vld [vmem:[#allocation1 + $0x12] sm:$0xff]
    %v65 = vld [vmem:[#allocation1 + $0x1b] sm:$0xff]
    %v66 = vld [vmem:[#allocation1 + $0x24] sm:$0xff]
    %v67 = vld [vmem:[#allocation1 + $0x2d] sm:$0xff]
    %v68 = vld [vmem:[#allocation1 + $0x36] sm:$0xff]
    %v69 = vld [vmem:[#allocation1 + $0x3f] sm:$0xff]
    %71 = vst [vmem:[#allocation1] ss:$9 sm:$0xff] %v18
    %v72 = vld [vmem:[#allocation1] sm:$0xff]
    %v73 = vld [vmem:[#allocation1 + $0x9] sm:$0xff]
    %v74 = vld [vmem:[#allocation1 + $0x12] sm:$0xff]
    %v75 = vld [vmem:[#allocation1 + $0x1b] sm:$0xff]
    %v76 = vld [vmem:[#allocation1 + $0x24] sm:$0xff]
    %v77 = vld [vmem:[#allocation1 + $0x2d] sm:$0xff]
    %v78 = vld [vmem:[#allocation1 + $0x36] sm:$0xff]
    %v79 = vld [vmem:[#allocation1 + $0x3f] sm:$0xff]
    %81 = vst [vmem:[#allocation1] ss:$9 sm:$0xff] %v19
    %v82 = vld [vmem:[#allocation1] sm:$0xff]
    %v133 = vunpack.c.l.b16 %v20
    %v134 = vunpack.c.h.b16 %v20
    %v135 = vunpack.c.l.b16 %v21
    %v136 = vunpack.c.h.b16 %v21
    %v137 = vunpack.c.l.b16 %v22
    %v138 = vunpack.c.h.b16 %v22
    %v139 = vunpack.c.l.b16 %v23
    %v140 = vunpack.c.h.b16 %v23
    %v141 = vunpack.c.l.b16 %v24
    %v142 = vunpack.c.h.b16 %v24
    %v143 = vunpack.c.l.b16 %v25
    %v144 = vunpack.c.h.b16 %v25
    %v145 = vunpack.c.l.b16 %v26
    %v146 = vunpack.c.h.b16 %v26
    %v147 = vunpack.c.l.b16 %v27
    %v148 = vunpack.c.h.b16 %v27
    %v149 = vunpack.c.l.b16 %v28
    %v150 = vunpack.c.h.b16 %v28
    %v151 = vunpack.c.l.b16 %v29
    %v152 = vunpack.c.h.b16 %v29
    %v153 = vunpack.c.l.b16 %v30
    %v154 = vunpack.c.h.b16 %v30
    %v155 = vunpack.c.l.b16 %v31
    %v156 = vunpack.c.h.b16 %v31
    %v157 = vunpack.c.l.b16 %v32
    %v158 = vunpack.c.l.b16 %v33
    %v159 = vunpack.c.h.b16 %v33
    %v160 = vunpack.c.l.b16 %v34
    %v161 = vunpack.c.h.b16 %v34
    %v162 = vunpack.c.l.b16 %v35
    %v163 = vunpack.c.h.b16 %v35
    %v164 = vunpack.c.l.b16 %v36
    %v165 = vunpack.c.h.b16 %v36
    %v166 = vunpack.c.l.b16 %v37
    %v167 = vunpack.c.h.b16 %v37
    %v168 = vunpack.c.l.b16 %v38
    %v169 = vunpack.c.h.b16 %v38
    %v170 = vunpack.c.l.b16 %v39
    %v171 = vunpack.c.h.b16 %v39
    %v172 = vunpack.c.l.b16 %v40
    %v173 = vunpack.c.h.b16 %v40
    %v174 = vunpack.c.l.b16 %v41
    %v175 = vunpack.c.h.b16 %v41
    %v176 = vunpack.c.l.b16 %v42
    %v177 = vunpack.c.h.b16 %v42
    %v178 = vunpack.c.l.b16 %v43
    %v179 = vunpack.c.h.b16 %v43
    %v180 = vunpack.c.l.b16 %v44
    %v181 = vunpack.c.h.b16 %v44
    %v182 = vunpack.c.l.b16 %v45
    %v183 = vpack.c.b16 %v158, %v133
    %v184 = vpack.c.b16 %v159, %v134
    %v185 = vpack.c.b16 %v160, %v135
    %v186 = vpack.c.b16 %v161, %v136
    %v187 = vpack.c.b16 %v162, %v137
    %v188 = vpack.c.b16 %v163, %v138
    %v189 = vpack.c.b16 %v164, %v139
    %v190 = vpack.c.b16 %v165, %v140
    %v191 = vpack.c.b16 %v166, %v141
    %v192 = vpack.c.b16 %v167, %v142
    %v193 = vpack.c.b16 %v168, %v143
    %v194 = vpack.c.b16 %v169, %v144
    %v195 = vpack.c.b16 %v170, %v145
    %v196 = vpack.c.b16 %v171, %v146
    %v197 = vpack.c.b16 %v172, %v147
    %v198 = vpack.c.b16 %v173, %v148
    %v199 = vpack.c.b16 %v174, %v149
    %v200 = vpack.c.b16 %v175, %v150
    %v201 = vpack.c.b16 %v176, %v151
    %v202 = vpack.c.b16 %v177, %v152
    %v203 = vpack.c.b16 %v178, %v153
    %v204 = vpack.c.b16 %v179, %v154
    %v205 = vpack.c.b16 %v180, %v155
    %v206 = vpack.c.b16 %v181, %v156
    %v207 = vpack.c.b16 %v182, %v157
    %vm232 = vcmask 523264
    %v233 = vsel %vm232, %v82, 0
    %v236 = vsel %vm232, %v207, 0
    %238 = vmatpush.bf16.xpose.msra.mxu0 0
    %239 = vmatpush.bf16.xpose.msra.mxu0 0
    %240 = vmatpush.bf16.xpose.msra.mxu0 0
    %241 = vmatpush.bf16.xpose.msra.mxu0 0
    %242 = vmatpush.bf16.xpose.msra.mxu0 0
    %243 = vmatpush.bf16.xpose.msra.mxu0 0
    %244 = vmatpush.bf16.xpose.msra.mxu0 0
    %245 = vmatpush.bf16.xpose.msra.mxu0 %v183
    %246 = vmatmul.bf16.gmra.mxu0 %v52
    %v247 = vpop.f32.mrf.mxu0
    %v248 = vadd.f32 %v48, %v247
    %v249 = vpop.f32.mrf.mxu0
    %250 = vdwg.mxu0
    %251 = vmatpush.bf16.xpose.msra.mxu0 0
    %252 = vmatpush.bf16.xpose.msra.mxu0 0
    %253 = vmatpush.bf16.xpose.msra.mxu0 0
    %254 = vmatpush.bf16.xpose.msra.mxu0 0
    %255 = vmatpush.bf16.xpose.msra.mxu0 0
    %256 = vmatpush.bf16.xpose.msra.mxu0 0
    %257 = vmatpush.bf16.xpose.msra.mxu0 0
    %258 = vmatpush.bf16.xpose.msra.mxu0 %v184
    %259 = vmatmul.bf16.gmra.mxu0 %v53
    %v260 = vpop.f32.mrf.mxu0
    %v261 = vadd.f32 %v248, %v260
    %v262 = vpop.f32.mrf.mxu0
    %263 = vdwg.mxu0
    %264 = vmatpush.bf16.xpose.msra.mxu0 0
    %265 = vmatpush.bf16.xpose.msra.mxu0 0
    %266 = vmatpush.bf16.xpose.msra.mxu0 0
    %267 = vmatpush.bf16.xpose.msra.mxu0 0
    %268 = vmatpush.bf16.xpose.msra.mxu0 0
    %269 = vmatpush.bf16.xpose.msra.mxu0 0
    %270 = vmatpush.bf16.xpose.msra.mxu0 0
    %271 = vmatpush.bf16.xpose.msra.mxu0 %v185
    %272 = vmatmul.bf16.gmra.mxu0 %v54
    %v273 = vpop.f32.mrf.mxu0
    %v274 = vadd.f32 %v261, %v273
    %v275 = vpop.f32.mrf.mxu0
    %276 = vdwg.mxu0
    %277 = vmatpush.bf16.xpose.msra.mxu0 0
    %278 = vmatpush.bf16.xpose.msra.mxu0 0
    %279 = vmatpush.bf16.xpose.msra.mxu0 0
    %280 = vmatpush.bf16.xpose.msra.mxu0 0
    %281 = vmatpush.bf16.xpose.msra.mxu0 0
    %282 = vmatpush.bf16.xpose.msra.mxu0 0
    %283 = vmatpush.bf16.xpose.msra.mxu0 0
    %284 = vmatpush.bf16.xpose.msra.mxu0 %v186
    %285 = vmatmul.bf16.gmra.mxu0 %v55
    %v286 = vpop.f32.mrf.mxu0
    %v287 = vadd.f32 %v274, %v286
    %v288 = vpop.f32.mrf.mxu0
    %289 = vdwg.mxu0
    %290 = vmatpush.bf16.xpose.msra.mxu0 0
    %291 = vmatpush.bf16.xpose.msra.mxu0 0
    %292 = vmatpush.bf16.xpose.msra.mxu0 0
    %293 = vmatpush.bf16.xpose.msra.mxu0 0
    %294 = vmatpush.bf16.xpose.msra.mxu0 0
    %295 = vmatpush.bf16.xpose.msra.mxu0 0
    %296 = vmatpush.bf16.xpose.msra.mxu0 0
    %297 = vmatpush.bf16.xpose.msra.mxu0 %v187
    %298 = vmatmul.bf16.gmra.mxu0 %v56
    %v299 = vpop.f32.mrf.mxu0
    %v300 = vadd.f32 %v287, %v299
    %v301 = vpop.f32.mrf.mxu0
    %302 = vdwg.mxu0
    %303 = vmatpush.bf16.xpose.msra.mxu0 0
    %304 = vmatpush.bf16.xpose.msra.mxu0 0
    %305 = vmatpush.bf16.xpose.msra.mxu0 0
    %306 = vmatpush.bf16.xpose.msra.mxu0 0
    %307 = vmatpush.bf16.xpose.msra.mxu0 0
    %308 = vmatpush.bf16.xpose.msra.mxu0 0
    %309 = vmatpush.bf16.xpose.msra.mxu0 0
    %310 = vmatpush.bf16.xpose.msra.mxu0 %v188
    %311 = vmatmul.bf16.gmra.mxu0 %v57
    %v312 = vpop.f32.mrf.mxu0
    %v313 = vadd.f32 %v300, %v312
    %v314 = vpop.f32.mrf.mxu0
    %315 = vdwg.mxu0
    %316 = vmatpush.bf16.xpose.msra.mxu0 0
    %317 = vmatpush.bf16.xpose.msra.mxu0 0
    %318 = vmatpush.bf16.xpose.msra.mxu0 0
    %319 = vmatpush.bf16.xpose.msra.mxu0 0
    %320 = vmatpush.bf16.xpose.msra.mxu0 0
    %321 = vmatpush.bf16.xpose.msra.mxu0 0
    %322 = vmatpush.bf16.xpose.msra.mxu0 0
    %323 = vmatpush.bf16.xpose.msra.mxu0 %v189
    %324 = vmatmul.bf16.gmra.mxu0 %v58
    %v325 = vpop.f32.mrf.mxu0
    %v326 = vadd.f32 %v313, %v325
    %v327 = vpop.f32.mrf.mxu0
    %328 = vdwg.mxu0
    %329 = vmatpush.bf16.xpose.msra.mxu0 0
    %330 = vmatpush.bf16.xpose.msra.mxu0 0
    %331 = vmatpush.bf16.xpose.msra.mxu0 0
    %332 = vmatpush.bf16.xpose.msra.mxu0 0
    %333 = vmatpush.bf16.xpose.msra.mxu0 0
    %334 = vmatpush.bf16.xpose.msra.mxu0 0
    %335 = vmatpush.bf16.xpose.msra.mxu0 0
    %336 = vmatpush.bf16.xpose.msra.mxu0 %v190
    %337 = vmatmul.bf16.gmra.mxu0 %v59
    %v338 = vpop.f32.mrf.mxu0
    %v339 = vadd.f32 %v326, %v338
    %v340 = vpop.f32.mrf.mxu0
    %341 = vdwg.mxu0
    %342 = vmatpush.bf16.xpose.msra.mxu0 0
    %343 = vmatpush.bf16.xpose.msra.mxu0 0
    %344 = vmatpush.bf16.xpose.msra.mxu0 0
    %345 = vmatpush.bf16.xpose.msra.mxu0 0
    %346 = vmatpush.bf16.xpose.msra.mxu0 0
    %347 = vmatpush.bf16.xpose.msra.mxu0 0
    %348 = vmatpush.bf16.xpose.msra.mxu0 0
    %349 = vmatpush.bf16.xpose.msra.mxu0 %v191
    %350 = vmatmul.bf16.gmra.mxu0 %v62
    %v351 = vpop.f32.mrf.mxu0
    %v352 = vadd.f32 %v339, %v351
    %v353 = vpop.f32.mrf.mxu0
    %354 = vdwg.mxu0
    %355 = vmatpush.bf16.xpose.msra.mxu0 0
    %356 = vmatpush.bf16.xpose.msra.mxu0 0
    %357 = vmatpush.bf16.xpose.msra.mxu0 0
    %358 = vmatpush.bf16.xpose.msra.mxu0 0
    %359 = vmatpush.bf16.xpose.msra.mxu0 0
    %360 = vmatpush.bf16.xpose.msra.mxu0 0
    %361 = vmatpush.bf16.xpose.msra.mxu0 0
    %362 = vmatpush.bf16.xpose.msra.mxu0 %v192
    %363 = vmatmul.bf16.gmra.mxu0 %v63
    %v364 = vpop.f32.mrf.mxu0
    %v365 = vadd.f32 %v352, %v364
    %v366 = vpop.f32.mrf.mxu0
    %367 = vdwg.mxu0
    %368 = vmatpush.bf16.xpose.msra.mxu0 0
    %369 = vmatpush.bf16.xpose.msra.mxu0 0
    %370 = vmatpush.bf16.xpose.msra.mxu0 0
    %371 = vmatpush.bf16.xpose.msra.mxu0 0
    %372 = vmatpush.bf16.xpose.msra.mxu0 0
    %373 = vmatpush.bf16.xpose.msra.mxu0 0
    %374 = vmatpush.bf16.xpose.msra.mxu0 0
    %375 = vmatpush.bf16.xpose.msra.mxu0 %v193
    %376 = vmatmul.bf16.gmra.mxu0 %v64
    %v377 = vpop.f32.mrf.mxu0
    %v378 = vadd.f32 %v365, %v377
    %v379 = vpop.f32.mrf.mxu0
    %380 = vdwg.mxu0
    %381 = vmatpush.bf16.xpose.msra.mxu0 0
    %382 = vmatpush.bf16.xpose.msra.mxu0 0
    %383 = vmatpush.bf16.xpose.msra.mxu0 0
    %384 = vmatpush.bf16.xpose.msra.mxu0 0
    %385 = vmatpush.bf16.xpose.msra.mxu0 0
    %386 = vmatpush.bf16.xpose.msra.mxu0 0
    %387 = vmatpush.bf16.xpose.msra.mxu0 0
    %388 = vmatpush.bf16.xpose.msra.mxu0 %v194
    %389 = vmatmul.bf16.gmra.mxu0 %v65
    %v390 = vpop.f32.mrf.mxu0
    %v391 = vadd.f32 %v378, %v390
    %v392 = vpop.f32.mrf.mxu0
    %393 = vdwg.mxu0
    %394 = vmatpush.bf16.xpose.msra.mxu0 0
    %395 = vmatpush.bf16.xpose.msra.mxu0 0
    %396 = vmatpush.bf16.xpose.msra.mxu0 0
    %397 = vmatpush.bf16.xpose.msra.mxu0 0
    %398 = vmatpush.bf16.xpose.msra.mxu0 0
    %399 = vmatpush.bf16.xpose.msra.mxu0 0
    %400 = vmatpush.bf16.xpose.msra.mxu0 0
    %401 = vmatpush.bf16.xpose.msra.mxu0 %v195
    %402 = vmatmul.bf16.gmra.mxu0 %v66
    %v403 = vpop.f32.mrf.mxu0
    %v404 = vadd.f32 %v391, %v403
    %v405 = vpop.f32.mrf.mxu0
    %406 = vdwg.mxu0
    %407 = vmatpush.bf16.xpose.msra.mxu0 0
    %408 = vmatpush.bf16.xpose.msra.mxu0 0
    %409 = vmatpush.bf16.xpose.msra.mxu0 0
    %410 = vmatpush.bf16.xpose.msra.mxu0 0
    %411 = vmatpush.bf16.xpose.msra.mxu0 0
    %412 = vmatpush.bf16.xpose.msra.mxu0 0
    %413 = vmatpush.bf16.xpose.msra.mxu0 0
    %414 = vmatpush.bf16.xpose.msra.mxu0 %v196
    %415 = vmatmul.bf16.gmra.mxu0 %v67
    %v416 = vpop.f32.mrf.mxu0
    %v417 = vadd.f32 %v404, %v416
    %v418 = vpop.f32.mrf.mxu0
    %419 = vdwg.mxu0
    %420 = vmatpush.bf16.xpose.msra.mxu0 0
    %421 = vmatpush.bf16.xpose.msra.mxu0 0
    %422 = vmatpush.bf16.xpose.msra.mxu0 0
    %423 = vmatpush.bf16.xpose.msra.mxu0 0
    %424 = vmatpush.bf16.xpose.msra.mxu0 0
    %425 = vmatpush.bf16.xpose.msra.mxu0 0
    %426 = vmatpush.bf16.xpose.msra.mxu0 0
    %427 = vmatpush.bf16.xpose.msra.mxu0 %v197
    %428 = vmatmul.bf16.gmra.mxu0 %v68
    %v429 = vpop.f32.mrf.mxu0
    %v430 = vadd.f32 %v417, %v429
    %v431 = vpop.f32.mrf.mxu0
    %432 = vdwg.mxu0
    %433 = vmatpush.bf16.xpose.msra.mxu0 0
    %434 = vmatpush.bf16.xpose.msra.mxu0 0
    %435 = vmatpush.bf16.xpose.msra.mxu0 0
    %436 = vmatpush.bf16.xpose.msra.mxu0 0
    %437 = vmatpush.bf16.xpose.msra.mxu0 0
    %438 = vmatpush.bf16.xpose.msra.mxu0 0
    %439 = vmatpush.bf16.xpose.msra.mxu0 0
    %440 = vmatpush.bf16.xpose.msra.mxu0 %v198
    %441 = vmatmul.bf16.gmra.mxu0 %v69
    %v442 = vpop.f32.mrf.mxu0
    %v443 = vadd.f32 %v430, %v442
    %v444 = vpop.f32.mrf.mxu0
    %445 = vdwg.mxu0
    %446 = vmatpush.bf16.xpose.msra.mxu0 0
    %447 = vmatpush.bf16.xpose.msra.mxu0 0
    %448 = vmatpush.bf16.xpose.msra.mxu0 0
    %449 = vmatpush.bf16.xpose.msra.mxu0 0
    %450 = vmatpush.bf16.xpose.msra.mxu0 0
    %451 = vmatpush.bf16.xpose.msra.mxu0 0
    %452 = vmatpush.bf16.xpose.msra.mxu0 0
    %453 = vmatpush.bf16.xpose.msra.mxu0 %v199
    %454 = vmatmul.bf16.gmra.mxu0 %v72
    %v455 = vpop.f32.mrf.mxu0
    %v456 = vadd.f32 %v443, %v455
    %v457 = vpop.f32.mrf.mxu0
    %458 = vdwg.mxu0
    %459 = vmatpush.bf16.xpose.msra.mxu0 0
    %460 = vmatpush.bf16.xpose.msra.mxu0 0
    %461 = vmatpush.bf16.xpose.msra.mxu0 0
    %462 = vmatpush.bf16.xpose.msra.mxu0 0
    %463 = vmatpush.bf16.xpose.msra.mxu0 0
    %464 = vmatpush.bf16.xpose.msra.mxu0 0
    %465 = vmatpush.bf16.xpose.msra.mxu0 0
    %466 = vmatpush.bf16.xpose.msra.mxu0 %v200
    %467 = vmatmul.bf16.gmra.mxu0 %v73
    %v468 = vpop.f32.mrf.mxu0
    %v469 = vadd.f32 %v456, %v468
    %v470 = vpop.f32.mrf.mxu0
    %471 = vdwg.mxu0
    %472 = vmatpush.bf16.xpose.msra.mxu0 0
    %473 = vmatpush.bf16.xpose.msra.mxu0 0
    %474 = vmatpush.bf16.xpose.msra.mxu0 0
    %475 = vmatpush.bf16.xpose.msra.mxu0 0
    %476 = vmatpush.bf16.xpose.msra.mxu0 0
    %477 = vmatpush.bf16.xpose.msra.mxu0 0
    %478 = vmatpush.bf16.xpose.msra.mxu0 0
    %479 = vmatpush.bf16.xpose.msra.mxu0 %v201
    %480 = vmatmul.bf16.gmra.mxu0 %v74
    %v481 = vpop.f32.mrf.mxu0
    %v482 = vadd.f32 %v469, %v481
    %v483 = vpop.f32.mrf.mxu0
    %484 = vdwg.mxu0
    %485 = vmatpush.bf16.xpose.msra.mxu0 0
    %486 = vmatpush.bf16.xpose.msra.mxu0 0
    %487 = vmatpush.bf16.xpose.msra.mxu0 0
    %488 = vmatpush.bf16.xpose.msra.mxu0 0
    %489 = vmatpush.bf16.xpose.msra.mxu0 0
    %490 = vmatpush.bf16.xpose.msra.mxu0 0
    %491 = vmatpush.bf16.xpose.msra.mxu0 0
    %492 = vmatpush.bf16.xpose.msra.mxu0 %v202
    %493 = vmatmul.bf16.gmra.mxu0 %v75
    %v494 = vpop.f32.mrf.mxu0
    %v495 = vadd.f32 %v482, %v494
    %v496 = vpop.f32.mrf.mxu0
    %497 = vdwg.mxu0
    %498 = vmatpush.bf16.xpose.msra.mxu0 0
    %499 = vmatpush.bf16.xpose.msra.mxu0 0
    %500 = vmatpush.bf16.xpose.msra.mxu0 0
    %501 = vmatpush.bf16.xpose.msra.mxu0 0
    %502 = vmatpush.bf16.xpose.msra.mxu0 0
    %503 = vmatpush.bf16.xpose.msra.mxu0 0
    %504 = vmatpush.bf16.xpose.msra.mxu0 0
    %505 = vmatpush.bf16.xpose.msra.mxu0 %v203
    %506 = vmatmul.bf16.gmra.mxu0 %v76
    %v507 = vpop.f32.mrf.mxu0
    %v508 = vadd.f32 %v495, %v507
    %v509 = vpop.f32.mrf.mxu0
    %510 = vdwg.mxu0
    %511 = vmatpush.bf16.xpose.msra.mxu0 0
    %512 = vmatpush.bf16.xpose.msra.mxu0 0
    %513 = vmatpush.bf16.xpose.msra.mxu0 0
    %514 = vmatpush.bf16.xpose.msra.mxu0 0
    %515 = vmatpush.bf16.xpose.msra.mxu0 0
    %516 = vmatpush.bf16.xpose.msra.mxu0 0
    %517 = vmatpush.bf16.xpose.msra.mxu0 0
    %518 = vmatpush.bf16.xpose.msra.mxu0 %v204
    %519 = vmatmul.bf16.gmra.mxu0 %v77
    %v520 = vpop.f32.mrf.mxu0
    %v521 = vadd.f32 %v508, %v520
    %v522 = vpop.f32.mrf.mxu0
    %523 = vdwg.mxu0
    %524 = vmatpush.bf16.xpose.msra.mxu0 0
    %525 = vmatpush.bf16.xpose.msra.mxu0 0
    %526 = vmatpush.bf16.xpose.msra.mxu0 0
    %527 = vmatpush.bf16.xpose.msra.mxu0 0
    %528 = vmatpush.bf16.xpose.msra.mxu0 0
    %529 = vmatpush.bf16.xpose.msra.mxu0 0
    %530 = vmatpush.bf16.xpose.msra.mxu0 0
    %531 = vmatpush.bf16.xpose.msra.mxu0 %v205
    %532 = vmatmul.bf16.gmra.mxu0 %v78
    %v533 = vpop.f32.mrf.mxu0
    %v534 = vadd.f32 %v521, %v533
    %v535 = vpop.f32.mrf.mxu0
    %536 = vdwg.mxu0
    %537 = vmatpush.bf16.xpose.msra.mxu0 0
    %538 = vmatpush.bf16.xpose.msra.mxu0 0
    %539 = vmatpush.bf16.xpose.msra.mxu0 0
    %540 = vmatpush.bf16.xpose.msra.mxu0 0
    %541 = vmatpush.bf16.xpose.msra.mxu0 0
    %542 = vmatpush.bf16.xpose.msra.mxu0 0
    %543 = vmatpush.bf16.xpose.msra.mxu0 0
    %544 = vmatpush.bf16.xpose.msra.mxu0 %v206
    %545 = vmatmul.bf16.gmra.mxu0 %v79
    %v546 = vpop.f32.mrf.mxu0
    %v547 = vadd.f32 %v534, %v546
    %v548 = vpop.f32.mrf.mxu0
    %549 = vdwg.mxu0
    %550 = vmatpush.bf16.xpose.msra.mxu0 0
    %551 = vmatpush.bf16.xpose.msra.mxu0 0
    %552 = vmatpush.bf16.xpose.msra.mxu0 0
    %553 = vmatpush.bf16.xpose.msra.mxu0 0
    %554 = vmatpush.bf16.xpose.msra.mxu0 0
    %555 = vmatpush.bf16.xpose.msra.mxu0 0
    %556 = vmatpush.bf16.xpose.msra.mxu0 0
    %557 = vmatpush.bf16.xpose.msra.mxu0 %v236
    %558 = vmatmul.bf16.gmra.mxu0 %v233
    %v559 = vpop.f32.mrf.mxu0
    %v560 = vadd.f32 %v547, %v559
    %v561 = vpop.f32.mrf.mxu0
    %562 = vdwg.mxu0
    %vm563 = vcmask 74752
    %564 = vst.msk [vmem:[#allocation2] sm:$0x3] %vm563, %v560
    // Predicated region
    $region14: #{simple_cnn_forward.3} parent=1 // pred_check
      _
    $region15: #{simple_cnn_forward.3} parent=1 // pred_check_branch
      %566 = sbr.rel (0) target = $region17
    $region16: #{simple_cnn_forward.3} parent=1 // pred_region
      %568 = vsyncadd [#allocation3], 0
      %s570 = sshll.u32 [#allocation2], 4
      %s571 = int_to_ptr.vmem [resolvable:$true] %s570
      %s572 = sshll.u32 %s3, 4
      %s573 = int_to_ptr.hbm [resolvable:$true] %s572
      %575 = dma.vmem_to_hbm [thread:$0]  %s571, 32, %s573, [#allocation3]
    $region17: #{simple_cnn_forward.3} parent=1 // pred_fallthru
      _
    // Predicated region
    $region18: #{simple_cnn_forward.3} parent=1 // pred_check
      _
    $region19: #{simple_cnn_forward.3} parent=1 // pred_check_branch
      %577 = sbr.rel (0) target = $region21
    $region20: #{simple_cnn_forward.3} parent=1 // pred_region
      %579 = dma.done [#allocation3], 32
    $region21: #{simple_cnn_forward.3} parent=1 // pred_fallthru
      _
    %580 = vsyncpa [#allocation3], 1

// kernel: simple_cnn_forward.2
$region0: #{simple_cnn_forward.2}
  #allocation0 [shape = 'u32[]', space=smem, size = 0x4, offset = 0x4, fixed_abs, tag = 'smem constant byte address 0x4 - core index']
  #allocation1 [shape = 'u32[72,128]{1,0:T(1,128)}', space=vmem, size = 0x9000, scoped, tag = 'internal scratch']
  %s0 = inlined_call_operand.vmem [shape: bf16[392,16], index: 0, kind: input, shape index: {}]
  %s1 = inlined_call_operand.vmem [shape: bf16[16,64], index: 1, kind: input, shape index: {}]
  %s2 = inlined_call_operand.vmem [shape: f32[1,16], index: 2, kind: input, shape index: {}]
  %s3 = inlined_call_operand.vmem [shape: bf16[392,16], index: 3, kind: output, shape index: {}]
  %s4 = sld [smem:[#allocation0]]
  $region22: #{simple_cnn_forward.2} parent=0
    _
  %s6 = ssub.s32 1, %s4
  %s7 = scalar_select 0, %s6, %s4
  // Predicated region
  $region2: #{simple_cnn_forward.2} parent=0 // pred_check
    _
  $region3: #{simple_cnn_forward.2} parent=0 // pred_check_branch
    %9 = sbr.rel (0) target = $region5
  $region4: #{simple_cnn_forward.2} parent=0 // pred_region
    _
  $region5: #{simple_cnn_forward.2} parent=0 // pred_fallthru
    _
  // Predicated region
  $region6: #{simple_cnn_forward.2} parent=0 // pred_check
    _
  $region7: #{simple_cnn_forward.2} parent=0 // pred_check_branch
    %11 = sbr.rel (0) target = $region9
  $region8: #{simple_cnn_forward.2} parent=0 // pred_region
    _
  $region9: #{simple_cnn_forward.2} parent=0 // pred_fallthru
    _
  // Predicated region
  $region10: #{simple_cnn_forward.2} parent=0 // pred_check
    _
  $region11: #{simple_cnn_forward.2} parent=0 // pred_check_branch
    %13 = sbr.rel (0) target = $region13
  $region12: #{simple_cnn_forward.2} parent=0 // pred_region
    _
  $region13: #{simple_cnn_forward.2} parent=0 // pred_fallthru
    _
  %v15 = vld [vmem:[%s0] sm:$0xf]
  %v16 = vld [vmem:[%s0 + $0x4] sm:$0xf]
  %v17 = vld [vmem:[%s0 + $0x8] sm:$0xf]
  %v18 = vld [vmem:[%s0 + $0xc] sm:$0xf]
  %v19 = vld [vmem:[%s0 + $0x10] sm:$0xf]
  %v20 = vld [vmem:[%s0 + $0x14] sm:$0xf]
  %v21 = vld [vmem:[%s0 + $0x18] sm:$0xf]
  %v22 = vld [vmem:[%s0 + $0x1c] sm:$0xf]
  %v23 = vld [vmem:[%s0 + $0x20] sm:$0xf]
  %v24 = vld [vmem:[%s0 + $0x24] sm:$0xf]
  %v25 = vld [vmem:[%s0 + $0x28] sm:$0xf]
  %v26 = vld [vmem:[%s0 + $0x2c] sm:$0xf]
  %v27 = vld [vmem:[%s0 + $0x30] sm:$0xf]
  %v28 = vld [vmem:[%s0 + $0x34] sm:$0xf]
  %v29 = vld [vmem:[%s0 + $0x38] sm:$0xf]
  %v30 = vld [vmem:[%s0 + $0x3c] sm:$0xf]
  %v31 = vld [vmem:[%s0 + $0x40] sm:$0xf]
  %v32 = vld [vmem:[%s0 + $0x44] sm:$0xf]
  %v33 = vld [vmem:[%s0 + $0x48] sm:$0xf]
  %v34 = vld [vmem:[%s0 + $0x4c] sm:$0xf]
  %v35 = vld [vmem:[%s0 + $0x50] sm:$0xf]
  %v36 = vld [vmem:[%s0 + $0x54] sm:$0xf]
  %v37 = vld [vmem:[%s0 + $0x58] sm:$0xf]
  %v38 = vld [vmem:[%s0 + $0x5c] sm:$0xf]
  %v39 = vld [vmem:[%s0 + $0x60] sm:$0xf]
  %v40 = vld [vmem:[%s0 + $0x64] sm:$0xf]
  %v41 = vld [vmem:[%s0 + $0x68] sm:$0xf]
  %v42 = vld [vmem:[%s0 + $0x6c] sm:$0xf]
  %v43 = vld [vmem:[%s0 + $0x70] sm:$0xf]
  %v44 = vld [vmem:[%s0 + $0x74] sm:$0xf]
  %v45 = vld [vmem:[%s0 + $0x78] sm:$0xf]
  %v46 = vld [vmem:[%s0 + $0x7c] sm:$0xf]
  %v47 = vld [vmem:[%s0 + $0x80] sm:$0xf]
  %v48 = vld [vmem:[%s0 + $0x84] sm:$0xf]
  %v49 = vld [vmem:[%s0 + $0x88] sm:$0xf]
  %v50 = vld [vmem:[%s0 + $0x8c] sm:$0xf]
  %v51 = vld [vmem:[%s0 + $0x90] sm:$0xf]
  %v52 = vld [vmem:[%s0 + $0x94] sm:$0xf]
  %v53 = vld [vmem:[%s0 + $0x98] sm:$0xf]
  %v54 = vld [vmem:[%s0 + $0x9c] sm:$0xf]
  %v55 = vld [vmem:[%s0 + $0xa0] sm:$0xf]
  %v56 = vld [vmem:[%s0 + $0xa4] sm:$0xf]
  %v57 = vld [vmem:[%s0 + $0xa8] sm:$0xf]
  %v58 = vld [vmem:[%s0 + $0xac] sm:$0xf]
  %v59 = vld [vmem:[%s0 + $0xb0] sm:$0xf]
  %v60 = vld [vmem:[%s0 + $0xb4] sm:$0xf]
  %v61 = vld [vmem:[%s0 + $0xb8] sm:$0xf]
  %v62 = vld [vmem:[%s0 + $0xbc] sm:$0xf]
  %v63 = vld [vmem:[%s0 + $0xc0] sm:$0xf]
  %v64 = vld [vmem:[%s1] sm:$0xf]
  %v65 = vld [vmem:[%s1 + $0x4] sm:$0xf]
  %v115 = vunpack.c.l.b16 %v15
  %v116 = vunpack.c.l.b16 %v16
  %v117 = vunpack.c.l.b16 %v17
  %v118 = vunpack.c.l.b16 %v18
  %v119 = vunpack.c.l.b16 %v19
  %v120 = vunpack.c.l.b16 %v20
  %v121 = vunpack.c.l.b16 %v21
  %v122 = vunpack.c.l.b16 %v22
  %v123 = vunpack.c.l.b16 %v23
  %v124 = vunpack.c.l.b16 %v24
  %v125 = vunpack.c.l.b16 %v25
  %v126 = vunpack.c.l.b16 %v26
  %v127 = vunpack.c.l.b16 %v27
  %v128 = vunpack.c.l.b16 %v28
  %v129 = vunpack.c.l.b16 %v29
  %v130 = vunpack.c.l.b16 %v30
  %v131 = vunpack.c.l.b16 %v31
  %v132 = vunpack.c.l.b16 %v32
  %v133 = vunpack.c.l.b16 %v33
  %v134 = vunpack.c.l.b16 %v34
  %v135 = vunpack.c.l.b16 %v35
  %v136 = vunpack.c.l.b16 %v36
  %v137 = vunpack.c.l.b16 %v37
  %v138 = vunpack.c.l.b16 %v38
  %v139 = vunpack.c.l.b16 %v39
  %v140 = vunpack.c.l.b16 %v40
  %v141 = vunpack.c.l.b16 %v41
  %v142 = vunpack.c.l.b16 %v42
  %v143 = vunpack.c.l.b16 %v43
  %v144 = vunpack.c.l.b16 %v44
  %v145 = vunpack.c.l.b16 %v45
  %v146 = vunpack.c.l.b16 %v46
  %v147 = vunpack.c.l.b16 %v47
  %v148 = vunpack.c.l.b16 %v48
  %v149 = vunpack.c.l.b16 %v49
  %v150 = vunpack.c.l.b16 %v50
  %v151 = vunpack.c.l.b16 %v51
  %v152 = vunpack.c.l.b16 %v52
  %v153 = vunpack.c.l.b16 %v53
  %v154 = vunpack.c.l.b16 %v54
  %v155 = vunpack.c.l.b16 %v55
  %v156 = vunpack.c.l.b16 %v56
  %v157 = vunpack.c.l.b16 %v57
  %v158 = vunpack.c.l.b16 %v58
  %v159 = vunpack.c.l.b16 %v59
  %v160 = vunpack.c.l.b16 %v60
  %v161 = vunpack.c.l.b16 %v61
  %v162 = vunpack.c.l.b16 %v62
  %v163 = vunpack.c.l.b16 %v63
  %v164 = vpack.c.b16 %v116, %v115
  %v165 = vpack.c.b16 %v118, %v117
  %v166 = vpack.c.b16 %v120, %v119
  %v167 = vpack.c.b16 %v122, %v121
  %v168 = vpack.c.b16 %v124, %v123
  %v169 = vpack.c.b16 %v126, %v125
  %v170 = vpack.c.b16 %v128, %v127
  %v171 = vpack.c.b16 %v130, %v129
  %v172 = vpack.c.b16 %v132, %v131
  %v173 = vpack.c.b16 %v134, %v133
  %v174 = vpack.c.b16 %v136, %v135
  %v175 = vpack.c.b16 %v138, %v137
  %v176 = vpack.c.b16 %v140, %v139
  %v177 = vpack.c.b16 %v142, %v141
  %v178 = vpack.c.b16 %v144, %v143
  %v179 = vpack.c.b16 %v146, %v145
  %v180 = vpack.c.b16 %v148, %v147
  %v181 = vpack.c.b16 %v150, %v149
  %v182 = vpack.c.b16 %v152, %v151
  %v183 = vpack.c.b16 %v154, %v153
  %v184 = vpack.c.b16 %v156, %v155
  %v185 = vpack.c.b16 %v158, %v157
  %v186 = vpack.c.b16 %v160, %v159
  %v187 = vpack.c.b16 %v162, %v161
  %v188 = vpack.c.b16 %v163, %v163
  %v191 = vunpack.c.l.b16 %v64
  %v192 = vunpack.c.l.b16 %v65
  %v193 = vpack.c.b16 %v192, %v191
  %vm195 = vcmask 130048
  %v197 = vsel %vm195, %v164, 0
  %v200 = vsel %vm195, %v165, 0
  %v203 = vsel %vm195, %v166, 0
  %v206 = vsel %vm195, %v167, 0
  %v209 = vsel %vm195, %v168, 0
  %v212 = vsel %vm195, %v169, 0
  %v215 = vsel %vm195, %v170, 0
  %v218 = vsel %vm195, %v171, 0
  %v221 = vsel %vm195, %v172, 0
  %v224 = vsel %vm195, %v173, 0
  %v227 = vsel %vm195, %v174, 0
  %v230 = vsel %vm195, %v175, 0
  %v233 = vsel %vm195, %v176, 0
  %v236 = vsel %vm195, %v177, 0
  %v239 = vsel %vm195, %v178, 0
  %v242 = vsel %vm195, %v179, 0
  %v245 = vsel %vm195, %v180, 0
  %v248 = vsel %vm195, %v181, 0
  %v251 = vsel %vm195, %v182, 0
  %v254 = vsel %vm195, %v183, 0
  %v257 = vsel %vm195, %v184, 0
  %v260 = vsel %vm195, %v185, 0
  %v263 = vsel %vm195, %v186, 0
  %v266 = vsel %vm195, %v187, 0
  %v269 = vsel %vm195, %v188, 0
  %271 = vmatpush.bf16.msra.mxu0 0
  %272 = vmatpush.bf16.msra.mxu0 0
  %273 = vmatpush.bf16.msra.mxu0 0
  %274 = vmatpush.bf16.msra.mxu0 0
  %275 = vmatpush.bf16.msra.mxu0 0
  %276 = vmatpush.bf16.msra.mxu0 0
  %277 = vmatpush.bf16.msra.mxu0 0
  %278 = vmatpush.bf16.msra.mxu0 %v193
  %279 = vmatmul.bf16.gmra.mxu0 %v197
  %v280 = vpop.f32.mrf.mxu0
  %v281 = vadd.f32 0.0, %v280
  %v282 = vpop.f32.mrf.mxu0
  %v283 = vadd.f32 0.0, %v282
  %284 = vmatmul.bf16.gmra.mxu0 %v200
  %v285 = vpop.f32.mrf.mxu0
  %v286 = vadd.f32 0.0, %v285
  %v287 = vpop.f32.mrf.mxu0
  %v288 = vadd.f32 0.0, %v287
  %289 = vmatmul.bf16.gmra.mxu0 %v203
  %v290 = vpop.f32.mrf.mxu0
  %v291 = vadd.f32 0.0, %v290
  %v292 = vpop.f32.mrf.mxu0
  %v293 = vadd.f32 0.0, %v292
  %294 = vmatmul.bf16.gmra.mxu0 %v206
  %v295 = vpop.f32.mrf.mxu0
  %v296 = vadd.f32 0.0, %v295
  %v297 = vpop.f32.mrf.mxu0
  %v298 = vadd.f32 0.0, %v297
  %299 = vmatmul.bf16.gmra.mxu0 %v209
  %v300 = vpop.f32.mrf.mxu0
  %v301 = vadd.f32 0.0, %v300
  %v302 = vpop.f32.mrf.mxu0
  %v303 = vadd.f32 0.0, %v302
  %304 = vmatmul.bf16.gmra.mxu0 %v212
  %v305 = vpop.f32.mrf.mxu0
  %v306 = vadd.f32 0.0, %v305
  %v307 = vpop.f32.mrf.mxu0
  %v308 = vadd.f32 0.0, %v307
  %309 = vmatmul.bf16.gmra.mxu0 %v215
  %v310 = vpop.f32.mrf.mxu0
  %v311 = vadd.f32 0.0, %v310
  %v312 = vpop.f32.mrf.mxu0
  %v313 = vadd.f32 0.0, %v312
  %314 = vmatmul.bf16.gmra.mxu0 %v218
  %v315 = vpop.f32.mrf.mxu0
  %v316 = vadd.f32 0.0, %v315
  %v317 = vpop.f32.mrf.mxu0
  %v318 = vadd.f32 0.0, %v317
  %319 = vmatmul.bf16.gmra.mxu0 %v221
  %v320 = vpop.f32.mrf.mxu0
  %v321 = vadd.f32 0.0, %v320
  %v322 = vpop.f32.mrf.mxu0
  %v323 = vadd.f32 0.0, %v322
  %324 = vmatmul.bf16.gmra.mxu0 %v224
  %v325 = vpop.f32.mrf.mxu0
  %v326 = vadd.f32 0.0, %v325
  %v327 = vpop.f32.mrf.mxu0
  %v328 = vadd.f32 0.0, %v327
  %329 = vmatmul.bf16.gmra.mxu0 %v227
  %v330 = vpop.f32.mrf.mxu0
  %v331 = vadd.f32 0.0, %v330
  %v332 = vpop.f32.mrf.mxu0
  %v333 = vadd.f32 0.0, %v332
  %334 = vmatmul.bf16.gmra.mxu0 %v230
  %v335 = vpop.f32.mrf.mxu0
  %v336 = vadd.f32 0.0, %v335
  %v337 = vpop.f32.mrf.mxu0
  %v338 = vadd.f32 0.0, %v337
  %339 = vmatmul.bf16.gmra.mxu0 %v233
  %v340 = vpop.f32.mrf.mxu0
  %v341 = vadd.f32 0.0, %v340
  %v342 = vpop.f32.mrf.mxu0
  %v343 = vadd.f32 0.0, %v342
  %344 = vmatmul.bf16.gmra.mxu0 %v236
  %v345 = vpop.f32.mrf.mxu0
  %v346 = vadd.f32 0.0, %v345
  %v347 = vpop.f32.mrf.mxu0
  %v348 = vadd.f32 0.0, %v347
  %349 = vmatmul.bf16.gmra.mxu0 %v239
  %v350 = vpop.f32.mrf.mxu0
  %v351 = vadd.f32 0.0, %v350
  %v352 = vpop.f32.mrf.mxu0
  %v353 = vadd.f32 0.0, %v352
  %354 = vmatmul.bf16.gmra.mxu0 %v242
  %v355 = vpop.f32.mrf.mxu0
  %v356 = vadd.f32 0.0, %v355
  %v357 = vpop.f32.mrf.mxu0
  %v358 = vadd.f32 0.0, %v357
  %359 = vmatmul.bf16.gmra.mxu0 %v245
  %v360 = vpop.f32.mrf.mxu0
  %v361 = vadd.f32 0.0, %v360
  %v362 = vpop.f32.mrf.mxu0
  %v363 = vadd.f32 0.0, %v362
  %364 = vmatmul.bf16.gmra.mxu0 %v248
  %v365 = vpop.f32.mrf.mxu0
  %v366 = vadd.f32 0.0, %v365
  %v367 = vpop.f32.mrf.mxu0
  %v368 = vadd.f32 0.0, %v367
  %369 = vmatmul.bf16.gmra.mxu0 %v251
  %v370 = vpop.f32.mrf.mxu0
  %v371 = vadd.f32 0.0, %v370
  %v372 = vpop.f32.mrf.mxu0
  %v373 = vadd.f32 0.0, %v372
  %374 = vmatmul.bf16.gmra.mxu0 %v254
  %v375 = vpop.f32.mrf.mxu0
  %v376 = vadd.f32 0.0, %v375
  %v377 = vpop.f32.mrf.mxu0
  %v378 = vadd.f32 0.0, %v377
  %379 = vmatmul.bf16.gmra.mxu0 %v257
  %v380 = vpop.f32.mrf.mxu0
  %v381 = vadd.f32 0.0, %v380
  %v382 = vpop.f32.mrf.mxu0
  %v383 = vadd.f32 0.0, %v382
  %384 = vmatmul.bf16.gmra.mxu0 %v260
  %v385 = vpop.f32.mrf.mxu0
  %v386 = vadd.f32 0.0, %v385
  %v387 = vpop.f32.mrf.mxu0
  %v388 = vadd.f32 0.0, %v387
  %389 = vmatmul.bf16.gmra.mxu0 %v263
  %v390 = vpop.f32.mrf.mxu0
  %v391 = vadd.f32 0.0, %v390
  %v392 = vpop.f32.mrf.mxu0
  %v393 = vadd.f32 0.0, %v392
  %394 = vmatmul.bf16.gmra.mxu0 %v266
  %v395 = vpop.f32.mrf.mxu0
  %v396 = vadd.f32 0.0, %v395
  %v397 = vpop.f32.mrf.mxu0
  %v398 = vadd.f32 0.0, %v397
  %399 = vmatmul.bf16.gmra.mxu0 %v269
  %v400 = vpop.f32.mrf.mxu0
  %v401 = vadd.f32 0.0, %v400
  %v402 = vpop.f32.mrf.mxu0
  %403 = vdwg.mxu0
  %453 = vrot.lane.b32.xlu0 %v281, 112
  %v454 = vpop.permute.xlu0 %453
  %455 = vrot.lane.b32.xlu0 %v283, 112
  %v456 = vpop.permute.xlu0 %455
  %457 = vrot.lane.b32.xlu0 %v286, 112
  %v458 = vpop.permute.xlu0 %457
  %459 = vrot.lane.b32.xlu0 %v288, 112
  %v460 = vpop.permute.xlu0 %459
  %461 = vrot.lane.b32.xlu0 %v291, 112
  %v462 = vpop.permute.xlu0 %461
  %463 = vrot.lane.b32.xlu0 %v293, 112
  %v464 = vpop.permute.xlu0 %463
  %465 = vrot.lane.b32.xlu0 %v296, 112
  %v466 = vpop.permute.xlu0 %465
  %467 = vrot.lane.b32.xlu0 %v298, 112
  %v468 = vpop.permute.xlu0 %467
  %469 = vrot.lane.b32.xlu0 %v301, 112
  %v470 = vpop.permute.xlu0 %469
  %471 = vrot.lane.b32.xlu0 %v303, 112
  %v472 = vpop.permute.xlu0 %471
  %473 = vrot.lane.b32.xlu0 %v306, 112
  %v474 = vpop.permute.xlu0 %473
  %475 = vrot.lane.b32.xlu0 %v308, 112
  %v476 = vpop.permute.xlu0 %475
  %477 = vrot.lane.b32.xlu0 %v311, 112
  %v478 = vpop.permute.xlu0 %477
  %479 = vrot.lane.b32.xlu0 %v313, 112
  %v480 = vpop.permute.xlu0 %479
  %481 = vrot.lane.b32.xlu0 %v316, 112
  %v482 = vpop.permute.xlu0 %481
  %483 = vrot.lane.b32.xlu0 %v318, 112
  %v484 = vpop.permute.xlu0 %483
  %485 = vrot.lane.b32.xlu0 %v321, 112
  %v486 = vpop.permute.xlu0 %485
  %487 = vrot.lane.b32.xlu0 %v323, 112
  %v488 = vpop.permute.xlu0 %487
  %489 = vrot.lane.b32.xlu0 %v326, 112
  %v490 = vpop.permute.xlu0 %489
  %491 = vrot.lane.b32.xlu0 %v328, 112
  %v492 = vpop.permute.xlu0 %491
  %493 = vrot.lane.b32.xlu0 %v331, 112
  %v494 = vpop.permute.xlu0 %493
  %495 = vrot.lane.b32.xlu0 %v333, 112
  %v496 = vpop.permute.xlu0 %495
  %497 = vrot.lane.b32.xlu0 %v336, 112
  %v498 = vpop.permute.xlu0 %497
  %499 = vrot.lane.b32.xlu0 %v338, 112
  %v500 = vpop.permute.xlu0 %499
  %501 = vrot.lane.b32.xlu0 %v341, 112
  %v502 = vpop.permute.xlu0 %501
  %503 = vrot.lane.b32.xlu0 %v343, 112
  %v504 = vpop.permute.xlu0 %503
  %505 = vrot.lane.b32.xlu0 %v346, 112
  %v506 = vpop.permute.xlu0 %505
  %507 = vrot.lane.b32.xlu0 %v348, 112
  %v508 = vpop.permute.xlu0 %507
  %509 = vrot.lane.b32.xlu0 %v351, 112
  %v510 = vpop.permute.xlu0 %509
  %511 = vrot.lane.b32.xlu0 %v353, 112
  %v512 = vpop.permute.xlu0 %511
  %513 = vrot.lane.b32.xlu0 %v356, 112
  %v514 = vpop.permute.xlu0 %513
  %515 = vrot.lane.b32.xlu0 %v358, 112
  %v516 = vpop.permute.xlu0 %515
  %517 = vrot.lane.b32.xlu0 %v361, 112
  %v518 = vpop.permute.xlu0 %517
  %519 = vrot.lane.b32.xlu0 %v363, 112
  %v520 = vpop.permute.xlu0 %519
  %521 = vrot.lane.b32.xlu0 %v366, 112
  %v522 = vpop.permute.xlu0 %521
  %523 = vrot.lane.b32.xlu0 %v368, 112
  %v524 = vpop.permute.xlu0 %523
  %525 = vrot.lane.b32.xlu0 %v371, 112
  %v526 = vpop.permute.xlu0 %525
  %527 = vrot.lane.b32.xlu0 %v373, 112
  %v528 = vpop.permute.xlu0 %527
  %529 = vrot.lane.b32.xlu0 %v376, 112
  %v530 = vpop.permute.xlu0 %529
  %531 = vrot.lane.b32.xlu0 %v378, 112
  %v532 = vpop.permute.xlu0 %531
  %533 = vrot.lane.b32.xlu0 %v381, 112
  %v534 = vpop.permute.xlu0 %533
  %535 = vrot.lane.b32.xlu0 %v383, 112
  %v536 = vpop.permute.xlu0 %535
  %537 = vrot.lane.b32.xlu0 %v386, 112
  %v538 = vpop.permute.xlu0 %537
  %539 = vrot.lane.b32.xlu0 %v388, 112
  %v540 = vpop.permute.xlu0 %539
  %541 = vrot.lane.b32.xlu0 %v391, 112
  %v542 = vpop.permute.xlu0 %541
  %543 = vrot.lane.b32.xlu0 %v393, 112
  %v544 = vpop.permute.xlu0 %543
  %545 = vrot.lane.b32.xlu0 %v396, 112
  %v546 = vpop.permute.xlu0 %545
  %547 = vrot.lane.b32.xlu0 %v398, 112
  %v548 = vpop.permute.xlu0 %547
  %549 = vrot.lane.b32.xlu0 %v401, 112
  %v550 = vpop.permute.xlu0 %549
  %v600 = vmax.f32 %v281, %v454
  %v601 = vmax.f32 %v283, %v456
  %v602 = vmax.f32 %v286, %v458
  %v603 = vmax.f32 %v288, %v460
  %v604 = vmax.f32 %v291, %v462
  %v605 = vmax.f32 %v293, %v464
  %v606 = vmax.f32 %v296, %v466
  %v607 = vmax.f32 %v298, %v468
  %v608 = vmax.f32 %v301, %v470
  %v609 = vmax.f32 %v303, %v472
  %v610 = vmax.f32 %v306, %v474
  %v611 = vmax.f32 %v308, %v476
  %v612 = vmax.f32 %v311, %v478
  %v613 = vmax.f32 %v313, %v480
  %v614 = vmax.f32 %v316, %v482
  %v615 = vmax.f32 %v318, %v484
  %v616 = vmax.f32 %v321, %v486
  %v617 = vmax.f32 %v323, %v488
  %v618 = vmax.f32 %v326, %v490
  %v619 = vmax.f32 %v328, %v492
  %v620 = vmax.f32 %v331, %v494
  %v621 = vmax.f32 %v333, %v496
  %v622 = vmax.f32 %v336, %v498
  %v623 = vmax.f32 %v338, %v500
  %v624 = vmax.f32 %v341, %v502
  %v625 = vmax.f32 %v343, %v504
  %v626 = vmax.f32 %v346, %v506
  %v627 = vmax.f32 %v348, %v508
  %v628 = vmax.f32 %v351, %v510
  %v629 = vmax.f32 %v353, %v512
  %v630 = vmax.f32 %v356, %v514
  %v631 = vmax.f32 %v358, %v516
  %v632 = vmax.f32 %v361, %v518
  %v633 = vmax.f32 %v363, %v520
  %v634 = vmax.f32 %v366, %v522
  %v635 = vmax.f32 %v368, %v524
  %v636 = vmax.f32 %v371, %v526
  %v637 = vmax.f32 %v373, %v528
  %v638 = vmax.f32 %v376, %v530
  %v639 = vmax.f32 %v378, %v532
  %v640 = vmax.f32 %v381, %v534
  %v641 = vmax.f32 %v383, %v536
  %v642 = vmax.f32 %v386, %v538
  %v643 = vmax.f32 %v388, %v540
  %v644 = vmax.f32 %v391, %v542
  %v645 = vmax.f32 %v393, %v544
  %v646 = vmax.f32 %v396, %v546
  %v647 = vmax.f32 %v398, %v548
  %v648 = vmax.f32 %v401, %v550
  %649 = vrot.lane.b32.xlu0 %v281, 96
  %v650 = vpop.permute.xlu0 %649
  %651 = vrot.lane.b32.xlu0 %v283, 96
  %v652 = vpop.permute.xlu0 %651
  %653 = vrot.lane.b32.xlu0 %v286, 96
  %v654 = vpop.permute.xlu0 %653
  %655 = vrot.lane.b32.xlu0 %v288, 96
  %v656 = vpop.permute.xlu0 %655
  %657 = vrot.lane.b32.xlu0 %v291, 96
  %v658 = vpop.permute.xlu0 %657
  %659 = vrot.lane.b32.xlu0 %v293, 96
  %v660 = vpop.permute.xlu0 %659
  %661 = vrot.lane.b32.xlu0 %v296, 96
  %v662 = vpop.permute.xlu0 %661
  %663 = vrot.lane.b32.xlu0 %v298, 96
  %v664 = vpop.permute.xlu0 %663
  %665 = vrot.lane.b32.xlu0 %v301, 96
  %v666 = vpop.permute.xlu0 %665
  %667 = vrot.lane.b32.xlu0 %v303, 96
  %v668 = vpop.permute.xlu0 %667
  %669 = vrot.lane.b32.xlu0 %v306, 96
  %v670 = vpop.permute.xlu0 %669
  %671 = vrot.lane.b32.xlu0 %v308, 96
  %v672 = vpop.permute.xlu0 %671
  %673 = vrot.lane.b32.xlu0 %v311, 96
  %v674 = vpop.permute.xlu0 %673
  %675 = vrot.lane.b32.xlu0 %v313, 96
  %v676 = vpop.permute.xlu0 %675
  %677 = vrot.lane.b32.xlu0 %v316, 96
  %v678 = vpop.permute.xlu0 %677
  %679 = vrot.lane.b32.xlu0 %v318, 96
  %v680 = vpop.permute.xlu0 %679
  %681 = vrot.lane.b32.xlu0 %v321, 96
  %v682 = vpop.permute.xlu0 %681
  %683 = vrot.lane.b32.xlu0 %v323, 96
  %v684 = vpop.permute.xlu0 %683
  %685 = vrot.lane.b32.xlu0 %v326, 96
  %v686 = vpop.permute.xlu0 %685
  %687 = vrot.lane.b32.xlu0 %v328, 96
  %v688 = vpop.permute.xlu0 %687
  %689 = vrot.lane.b32.xlu0 %v331, 96
  %v690 = vpop.permute.xlu0 %689
  %691 = vrot.lane.b32.xlu0 %v333, 96
  %v692 = vpop.permute.xlu0 %691
  %693 = vrot.lane.b32.xlu0 %v336, 96
  %v694 = vpop.permute.xlu0 %693
  %695 = vrot.lane.b32.xlu0 %v338, 96
  %v696 = vpop.permute.xlu0 %695
  %697 = vrot.lane.b32.xlu0 %v341, 96
  %v698 = vpop.permute.xlu0 %697
  %699 = vrot.lane.b32.xlu0 %v343, 96
  %v700 = vpop.permute.xlu0 %699
  %701 = vrot.lane.b32.xlu0 %v346, 96
  %v702 = vpop.permute.xlu0 %701
  %703 = vrot.lane.b32.xlu0 %v348, 96
  %v704 = vpop.permute.xlu0 %703
  %705 = vrot.lane.b32.xlu0 %v351, 96
  %v706 = vpop.permute.xlu0 %705
  %707 = vrot.lane.b32.xlu0 %v353, 96
  %v708 = vpop.permute.xlu0 %707
  %709 = vrot.lane.b32.xlu0 %v356, 96
  %v710 = vpop.permute.xlu0 %709
  %711 = vrot.lane.b32.xlu0 %v358, 96
  %v712 = vpop.permute.xlu0 %711
  %713 = vrot.lane.b32.xlu0 %v361, 96
  %v714 = vpop.permute.xlu0 %713
  %715 = vrot.lane.b32.xlu0 %v363, 96
  %v716 = vpop.permute.xlu0 %715
  %717 = vrot.lane.b32.xlu0 %v366, 96
  %v718 = vpop.permute.xlu0 %717
  %719 = vrot.lane.b32.xlu0 %v368, 96
  %v720 = vpop.permute.xlu0 %719
  %721 = vrot.lane.b32.xlu0 %v371, 96
  %v722 = vpop.permute.xlu0 %721
  %723 = vrot.lane.b32.xlu0 %v373, 96
  %v724 = vpop.permute.xlu0 %723
  %725 = vrot.lane.b32.xlu0 %v376, 96
  %v726 = vpop.permute.xlu0 %725
  %727 = vrot.lane.b32.xlu0 %v378, 96
  %v728 = vpop.permute.xlu0 %727
  %729 = vrot.lane.b32.xlu0 %v381, 96
  %v730 = vpop.permute.xlu0 %729
  %731 = vrot.lane.b32.xlu0 %v383, 96
  %v732 = vpop.permute.xlu0 %731
  %733 = vrot.lane.b32.xlu0 %v386, 96
  %v734 = vpop.permute.xlu0 %733
  %735 = vrot.lane.b32.xlu0 %v388, 96
  %v736 = vpop.permute.xlu0 %735
  %737 = vrot.lane.b32.xlu0 %v391, 96
  %v738 = vpop.permute.xlu0 %737
  %739 = vrot.lane.b32.xlu0 %v393, 96
  %v740 = vpop.permute.xlu0 %739
  %741 = vrot.lane.b32.xlu0 %v396, 96
  %v742 = vpop.permute.xlu0 %741
  %743 = vrot.lane.b32.xlu0 %v398, 96
  %v744 = vpop.permute.xlu0 %743
  %745 = vrot.lane.b32.xlu0 %v401, 96
  %v746 = vpop.permute.xlu0 %745
  %v796 = vmax.f32 %v600, %v650
  %v797 = vmax.f32 %v601, %v652
  %v798 = vmax.f32 %v602, %v654
  %v799 = vmax.f32 %v603, %v656
  %v800 = vmax.f32 %v604, %v658
  %v801 = vmax.f32 %v605, %v660
  %v802 = vmax.f32 %v606, %v662
  %v803 = vmax.f32 %v607, %v664
  %v804 = vmax.f32 %v608, %v666
  %v805 = vmax.f32 %v609, %v668
  %v806 = vmax.f32 %v610, %v670
  %v807 = vmax.f32 %v611, %v672
  %v808 = vmax.f32 %v612, %v674
  %v809 = vmax.f32 %v613, %v676
  %v810 = vmax.f32 %v614, %v678
  %v811 = vmax.f32 %v615, %v680
  %v812 = vmax.f32 %v616, %v682
  %v813 = vmax.f32 %v617, %v684
  %v814 = vmax.f32 %v618, %v686
  %v815 = vmax.f32 %v619, %v688
  %v816 = vmax.f32 %v620, %v690
  %v817 = vmax.f32 %v621, %v692
  %v818 = vmax.f32 %v622, %v694
  %v819 = vmax.f32 %v623, %v696
  %v820 = vmax.f32 %v624, %v698
  %v821 = vmax.f32 %v625, %v700
  %v822 = vmax.f32 %v626, %v702
  %v823 = vmax.f32 %v627, %v704
  %v824 = vmax.f32 %v628, %v706
  %v825 = vmax.f32 %v629, %v708
  %v826 = vmax.f32 %v630, %v710
  %v827 = vmax.f32 %v631, %v712
  %v828 = vmax.f32 %v632, %v714
  %v829 = vmax.f32 %v633, %v716
  %v830 = vmax.f32 %v634, %v718
  %v831 = vmax.f32 %v635, %v720
  %v832 = vmax.f32 %v636, %v722
  %v833 = vmax.f32 %v637, %v724
  %v834 = vmax.f32 %v638, %v726
  %v835 = vmax.f32 %v639, %v728
  %v836 = vmax.f32 %v640, %v730
  %v837 = vmax.f32 %v641, %v732
  %v838 = vmax.f32 %v642, %v734
  %v839 = vmax.f32 %v643, %v736
  %v840 = vmax.f32 %v644, %v738
  %v841 = vmax.f32 %v645, %v740
  %v842 = vmax.f32 %v646, %v742
  %v843 = vmax.f32 %v647, %v744
  %v844 = vmax.f32 %v648, %v746
  %845 = vrot.lane.b32.xlu0 %v281, 80
  %v846 = vpop.permute.xlu0 %845
  %847 = vrot.lane.b32.xlu0 %v283, 80
  %v848 = vpop.permute.xlu0 %847
  %849 = vrot.lane.b32.xlu0 %v286, 80
  %v850 = vpop.permute.xlu0 %849
  %851 = vrot.lane.b32.xlu0 %v288, 80
  %v852 = vpop.permute.xlu0 %851
  %853 = vrot.lane.b32.xlu0 %v291, 80
  %v854 = vpop.permute.xlu0 %853
  %855 = vrot.lane.b32.xlu0 %v293, 80
  %v856 = vpop.permute.xlu0 %855
  %857 = vrot.lane.b32.xlu0 %v296, 80
  %v858 = vpop.permute.xlu0 %857
  %859 = vrot.lane.b32.xlu0 %v298, 80
  %v860 = vpop.permute.xlu0 %859
  %861 = vrot.lane.b32.xlu0 %v301, 80
  %v862 = vpop.permute.xlu0 %861
  %863 = vrot.lane.b32.xlu0 %v303, 80
  %v864 = vpop.permute.xlu0 %863
  %865 = vrot.lane.b32.xlu0 %v306, 80
  %v866 = vpop.permute.xlu0 %865
  %867 = vrot.lane.b32.xlu0 %v308, 80
  %v868 = vpop.permute.xlu0 %867
  %869 = vrot.lane.b32.xlu0 %v311, 80
  %v870 = vpop.permute.xlu0 %869
  %871 = vrot.lane.b32.xlu0 %v313, 80
  %v872 = vpop.permute.xlu0 %871
  %873 = vrot.lane.b32.xlu0 %v316, 80
  %v874 = vpop.permute.xlu0 %873
  %875 = vrot.lane.b32.xlu0 %v318, 80
  %v876 = vpop.permute.xlu0 %875
  %877 = vrot.lane.b32.xlu0 %v321, 80
  %v878 = vpop.permute.xlu0 %877
  %879 = vrot.lane.b32.xlu0 %v323, 80
  %v880 = vpop.permute.xlu0 %879
  %881 = vrot.lane.b32.xlu0 %v326, 80
  %v882 = vpop.permute.xlu0 %881
  %883 = vrot.lane.b32.xlu0 %v328, 80
  %v884 = vpop.permute.xlu0 %883
  %885 = vrot.lane.b32.xlu0 %v331, 80
  %v886 = vpop.permute.xlu0 %885
  %887 = vrot.lane.b32.xlu0 %v333, 80
  %v888 = vpop.permute.xlu0 %887
  %889 = vrot.lane.b32.xlu0 %v336, 80
  %v890 = vpop.permute.xlu0 %889
  %891 = vrot.lane.b32.xlu0 %v338, 80
  %v892 = vpop.permute.xlu0 %891
  %893 = vrot.lane.b32.xlu0 %v341, 80
  %v894 = vpop.permute.xlu0 %893
  %895 = vrot.lane.b32.xlu0 %v343, 80
  %v896 = vpop.permute.xlu0 %895
  %897 = vrot.lane.b32.xlu0 %v346, 80
  %v898 = vpop.permute.xlu0 %897
  %899 = vrot.lane.b32.xlu0 %v348, 80
  %v900 = vpop.permute.xlu0 %899
  %901 = vrot.lane.b32.xlu0 %v351, 80
  %v902 = vpop.permute.xlu0 %901
  %903 = vrot.lane.b32.xlu0 %v353, 80
  %v904 = vpop.permute.xlu0 %903
  %905 = vrot.lane.b32.xlu0 %v356, 80
  %v906 = vpop.permute.xlu0 %905
  %907 = vrot.lane.b32.xlu0 %v358, 80
  %v908 = vpop.permute.xlu0 %907
  %909 = vrot.lane.b32.xlu0 %v361, 80
  %v910 = vpop.permute.xlu0 %909
  %911 = vrot.lane.b32.xlu0 %v363, 80
  %v912 = vpop.permute.xlu0 %911
  %913 = vrot.lane.b32.xlu0 %v366, 80
  %v914 = vpop.permute.xlu0 %913
  %915 = vrot.lane.b32.xlu0 %v368, 80
  %v916 = vpop.permute.xlu0 %915
  %917 = vrot.lane.b32.xlu0 %v371, 80
  %v918 = vpop.permute.xlu0 %917
  %919 = vrot.lane.b32.xlu0 %v373, 80
  %v920 = vpop.permute.xlu0 %919
  %921 = vrot.lane.b32.xlu0 %v376, 80
  %v922 = vpop.permute.xlu0 %921
  %923 = vrot.lane.b32.xlu0 %v378, 80
  %v924 = vpop.permute.xlu0 %923
  %925 = vrot.lane.b32.xlu0 %v381, 80
  %v926 = vpop.permute.xlu0 %925
  %927 = vrot.lane.b32.xlu0 %v383, 80
  %v928 = vpop.permute.xlu0 %927
  %929 = vrot.lane.b32.xlu0 %v386, 80
  %v930 = vpop.permute.xlu0 %929
  %931 = vrot.lane.b32.xlu0 %v388, 80
  %v932 = vpop.permute.xlu0 %931
  %933 = vrot.lane.b32.xlu0 %v391, 80
  %v934 = vpop.permute.xlu0 %933
  %935 = vrot.lane.b32.xlu0 %v393, 80
  %v936 = vpop.permute.xlu0 %935
  %937 = vrot.lane.b32.xlu0 %v396, 80
  %v938 = vpop.permute.xlu0 %937
  %939 = vrot.lane.b32.xlu0 %v398, 80
  %v940 = vpop.permute.xlu0 %939
  %941 = vrot.lane.b32.xlu0 %v401, 80
  %v942 = vpop.permute.xlu0 %941
  %v992 = vmax.f32 %v796, %v846
  %v993 = vmax.f32 %v797, %v848
  %v994 = vmax.f32 %v798, %v850
  %v995 = vmax.f32 %v799, %v852
  %v996 = vmax.f32 %v800, %v854
  %v997 = vmax.f32 %v801, %v856
  %v998 = vmax.f32 %v802, %v858
  %v999 = vmax.f32 %v803, %v860
  %v1000 = vmax.f32 %v804, %v862
  %v1001 = vmax.f32 %v805, %v864
  %v1002 = vmax.f32 %v806, %v866
  %v1003 = vmax.f32 %v807, %v868
  %v1004 = vmax.f32 %v808, %v870
  %v1005 = vmax.f32 %v809, %v872
  %v1006 = vmax.f32 %v810, %v874
  %v1007 = vmax.f32 %v811, %v876
  %v1008 = vmax.f32 %v812, %v878
  %v1009 = vmax.f32 %v813, %v880
  %v1010 = vmax.f32 %v814, %v882
  %v1011 = vmax.f32 %v815, %v884
  %v1012 = vmax.f32 %v816, %v886
  %v1013 = vmax.f32 %v817, %v888
  %v1014 = vmax.f32 %v818, %v890
  %v1015 = vmax.f32 %v819, %v892
  %v1016 = vmax.f32 %v820, %v894
  %v1017 = vmax.f32 %v821, %v896
  %v1018 = vmax.f32 %v822, %v898
  %v1019 = vmax.f32 %v823, %v900
  %v1020 = vmax.f32 %v824, %v902
  %v1021 = vmax.f32 %v825, %v904
  %v1022 = vmax.f32 %v826, %v906
  %v1023 = vmax.f32 %v827, %v908
  %v1024 = vmax.f32 %v828, %v910
  %v1025 = vmax.f32 %v829, %v912
  %v1026 = vmax.f32 %v830, %v914
  %v1027 = vmax.f32 %v831, %v916
  %v1028 = vmax.f32 %v832, %v918
  %v1029 = vmax.f32 %v833, %v920
  %v1030 = vmax.f32 %v834, %v922
  %v1031 = vmax.f32 %v835, %v924
  %v1032 = vmax.f32 %v836, %v926
  %v1033 = vmax.f32 %v837, %v928
  %v1034 = vmax.f32 %v838, %v930
  %v1035 = vmax.f32 %v839, %v932
  %v1036 = vmax.f32 %v840, %v934
  %v1037 = vmax.f32 %v841, %v936
  %v1038 = vmax.f32 %v842, %v938
  %v1039 = vmax.f32 %v843, %v940
  %v1040 = vmax.f32 %v844, %v942
  %v1041 = vld [vmem:[%s2] sm:$0x1]
  %v1043 = vperm.slane %v1041, 0
  %v1045 = vadd.f32 %v992, %v1043
  %v1046 = vadd.f32 %v993, %v1043
  %v1047 = vadd.f32 %v994, %v1043
  %v1048 = vadd.f32 %v995, %v1043
  %v1049 = vadd.f32 %v996, %v1043
  %v1050 = vadd.f32 %v997, %v1043
  %v1051 = vadd.f32 %v998, %v1043
  %v1052 = vadd.f32 %v999, %v1043
  %v1053 = vadd.f32 %v1000, %v1043
  %v1054 = vadd.f32 %v1001, %v1043
  %v1055 = vadd.f32 %v1002, %v1043
  %v1056 = vadd.f32 %v1003, %v1043
  %v1057 = vadd.f32 %v1004, %v1043
  %v1058 = vadd.f32 %v1005, %v1043
  %v1059 = vadd.f32 %v1006, %v1043
  %v1060 = vadd.f32 %v1007, %v1043
  %v1061 = vadd.f32 %v1008, %v1043
  %v1062 = vadd.f32 %v1009, %v1043
  %v1063 = vadd.f32 %v1010, %v1043
  %v1064 = vadd.f32 %v1011, %v1043
  %v1065 = vadd.f32 %v1012, %v1043
  %v1066 = vadd.f32 %v1013, %v1043
  %v1067 = vadd.f32 %v1014, %v1043
  %v1068 = vadd.f32 %v1015, %v1043
  %v1069 = vadd.f32 %v1016, %v1043
  %v1070 = vadd.f32 %v1017, %v1043
  %v1071 = vadd.f32 %v1018, %v1043
  %v1072 = vadd.f32 %v1019, %v1043
  %v1073 = vadd.f32 %v1020, %v1043
  %v1074 = vadd.f32 %v1021, %v1043
  %v1075 = vadd.f32 %v1022, %v1043
  %v1076 = vadd.f32 %v1023, %v1043
  %v1077 = vadd.f32 %v1024, %v1043
  %v1078 = vadd.f32 %v1025, %v1043
  %v1079 = vadd.f32 %v1026, %v1043
  %v1080 = vadd.f32 %v1027, %v1043
  %v1081 = vadd.f32 %v1028, %v1043
  %v1082 = vadd.f32 %v1029, %v1043
  %v1083 = vadd.f32 %v1030, %v1043
  %v1084 = vadd.f32 %v1031, %v1043
  %v1085 = vadd.f32 %v1032, %v1043
  %v1086 = vadd.f32 %v1033, %v1043
  %v1087 = vadd.f32 %v1034, %v1043
  %v1088 = vadd.f32 %v1035, %v1043
  %v1089 = vadd.f32 %v1036, %v1043
  %v1090 = vadd.f32 %v1037, %v1043
  %v1091 = vadd.f32 %v1038, %v1043
  %v1092 = vadd.f32 %v1039, %v1043
  %v1093 = vadd.f32 %v1040, %v1043
  %v1094 = vmax.f32 %v1045, 0.0
  %v1095 = vmax.f32 %v1046, 0.0
  %v1096 = vmax.f32 %v1047, 0.0
  %v1097 = vmax.f32 %v1048, 0.0
  %v1098 = vmax.f32 %v1049, 0.0
  %v1099 = vmax.f32 %v1050, 0.0
  %v1100 = vmax.f32 %v1051, 0.0
  %v1101 = vmax.f32 %v1052, 0.0
  %v1102 = vmax.f32 %v1053, 0.0
  %v1103 = vmax.f32 %v1054, 0.0
  %v1104 = vmax.f32 %v1055, 0.0
  %v1105 = vmax.f32 %v1056, 0.0
  %v1106 = vmax.f32 %v1057, 0.0
  %v1107 = vmax.f32 %v1058, 0.0
  %v1108 = vmax.f32 %v1059, 0.0
  %v1109 = vmax.f32 %v1060, 0.0
  %v1110 = vmax.f32 %v1061, 0.0
  %v1111 = vmax.f32 %v1062, 0.0
  %v1112 = vmax.f32 %v1063, 0.0
  %v1113 = vmax.f32 %v1064, 0.0
  %v1114 = vmax.f32 %v1065, 0.0
  %v1115 = vmax.f32 %v1066, 0.0
  %v1116 = vmax.f32 %v1067, 0.0
  %v1117 = vmax.f32 %v1068, 0.0
  %v1118 = vmax.f32 %v1069, 0.0
  %v1119 = vmax.f32 %v1070, 0.0
  %v1120 = vmax.f32 %v1071, 0.0
  %v1121 = vmax.f32 %v1072, 0.0
  %v1122 = vmax.f32 %v1073, 0.0
  %v1123 = vmax.f32 %v1074, 0.0
  %v1124 = vmax.f32 %v1075, 0.0
  %v1125 = vmax.f32 %v1076, 0.0
  %v1126 = vmax.f32 %v1077, 0.0
  %v1127 = vmax.f32 %v1078, 0.0
  %v1128 = vmax.f32 %v1079, 0.0
  %v1129 = vmax.f32 %v1080, 0.0
  %v1130 = vmax.f32 %v1081, 0.0
  %v1131 = vmax.f32 %v1082, 0.0
  %v1132 = vmax.f32 %v1083, 0.0
  %v1133 = vmax.f32 %v1084, 0.0
  %v1134 = vmax.f32 %v1085, 0.0
  %v1135 = vmax.f32 %v1086, 0.0
  %v1136 = vmax.f32 %v1087, 0.0
  %v1137 = vmax.f32 %v1088, 0.0
  %v1138 = vmax.f32 %v1089, 0.0
  %v1139 = vmax.f32 %v1090, 0.0
  %v1140 = vmax.f32 %v1091, 0.0
  %v1141 = vmax.f32 %v1092, 0.0
  %v1142 = vmax.f32 %v1093, 0.0
  %v1143 = vpack.c.bf16 %v1094, %v1094
  %v1144 = vpack.c.bf16 %v1095, %v1095
  %v1145 = vpack.c.bf16 %v1096, %v1096
  %v1146 = vpack.c.bf16 %v1097, %v1097
  %v1147 = vpack.c.bf16 %v1098, %v1098
  %v1148 = vpack.c.bf16 %v1099, %v1099
  %v1149 = vpack.c.bf16 %v1100, %v1100
  %v1150 = vpack.c.bf16 %v1101, %v1101
  %v1151 = vpack.c.bf16 %v1102, %v1102
  %v1152 = vpack.c.bf16 %v1103, %v1103
  %v1153 = vpack.c.bf16 %v1104, %v1104
  %v1154 = vpack.c.bf16 %v1105, %v1105
  %v1155 = vpack.c.bf16 %v1106, %v1106
  %v1156 = vpack.c.bf16 %v1107, %v1107
  %v1157 = vpack.c.bf16 %v1108, %v1108
  %v1158 = vpack.c.bf16 %v1109, %v1109
  %v1159 = vpack.c.bf16 %v1110, %v1110
  %v1160 = vpack.c.bf16 %v1111, %v1111
  %v1161 = vpack.c.bf16 %v1112, %v1112
  %v1162 = vpack.c.bf16 %v1113, %v1113
  %v1163 = vpack.c.bf16 %v1114, %v1114
  %v1164 = vpack.c.bf16 %v1115, %v1115
  %v1165 = vpack.c.bf16 %v1116, %v1116
  %v1166 = vpack.c.bf16 %v1117, %v1117
  %v1167 = vpack.c.bf16 %v1118, %v1118
  %v1168 = vpack.c.bf16 %v1119, %v1119
  %v1169 = vpack.c.bf16 %v1120, %v1120
  %v1170 = vpack.c.bf16 %v1121, %v1121
  %v1171 = vpack.c.bf16 %v1122, %v1122
  %v1172 = vpack.c.bf16 %v1123, %v1123
  %v1173 = vpack.c.bf16 %v1124, %v1124
  %v1174 = vpack.c.bf16 %v1125, %v1125
  %v1175 = vpack.c.bf16 %v1126, %v1126
  %v1176 = vpack.c.bf16 %v1127, %v1127
  %v1177 = vpack.c.bf16 %v1128, %v1128
  %v1178 = vpack.c.bf16 %v1129, %v1129
  %v1179 = vpack.c.bf16 %v1130, %v1130
  %v1180 = vpack.c.bf16 %v1131, %v1131
  %v1181 = vpack.c.bf16 %v1132, %v1132
  %v1182 = vpack.c.bf16 %v1133, %v1133
  %v1183 = vpack.c.bf16 %v1134, %v1134
  %v1184 = vpack.c.bf16 %v1135, %v1135
  %v1185 = vpack.c.bf16 %v1136, %v1136
  %v1186 = vpack.c.bf16 %v1137, %v1137
  %v1187 = vpack.c.bf16 %v1138, %v1138
  %v1188 = vpack.c.bf16 %v1139, %v1139
  %v1189 = vpack.c.bf16 %v1140, %v1140
  %v1190 = vpack.c.bf16 %v1141, %v1141
  %v1191 = vpack.c.bf16 %v1142, %v1142
  %vm1192 = vcmask 125952
  %1193 = vst.msk [vmem:[%s3] sm:$0xf] %vm1192, %v1143
  %1194 = vst.msk [vmem:[%s3 + $0x4] sm:$0xf] %vm1192, %v1144
  %1195 = vst.msk [vmem:[%s3 + $0x8] sm:$0xf] %vm1192, %v1145
  %1196 = vst.msk [vmem:[%s3 + $0xc] sm:$0xf] %vm1192, %v1146
  %1197 = vst.msk [vmem:[%s3 + $0x10] sm:$0xf] %vm1192, %v1147
  %1198 = vst.msk [vmem:[%s3 + $0x14] sm:$0xf] %vm1192, %v1148
  %1199 = vst.msk [vmem:[%s3 + $0x18] sm:$0xf] %vm1192, %v1149
  %1200 = vst.msk [vmem:[%s3 + $0x1c] sm:$0xf] %vm1192, %v1150
  %1201 = vst.msk [vmem:[%s3 + $0x20] sm:$0xf] %vm1192, %v1151
  %1202 = vst.msk [vmem:[%s3 + $0x24] sm:$0xf] %vm1192, %v1152
  %1203 = vst.msk [vmem:[%s3 + $0x28] sm:$0xf] %vm1192, %v1153
  %1204 = vst.msk [vmem:[%s3 + $0x2c] sm:$0xf] %vm1192, %v1154
  %1205 = vst.msk [vmem:[%s3 + $0x30] sm:$0xf] %vm1192, %v1155
  %1206 = vst.msk [vmem:[%s3 + $0x34] sm:$0xf] %vm1192, %v1156
  %1207 = vst.msk [vmem:[%s3 + $0x38] sm:$0xf] %vm1192, %v1157
  %1208 = vst.msk [vmem:[%s3 + $0x3c] sm:$0xf] %vm1192, %v1158
  %1209 = vst.msk [vmem:[%s3 + $0x40] sm:$0xf] %vm1192, %v1159
  %1210 = vst.msk [vmem:[%s3 + $0x44] sm:$0xf] %vm1192, %v1160
  %1211 = vst.msk [vmem:[%s3 + $0x48] sm:$0xf] %vm1192, %v1161
  %1212 = vst.msk [vmem:[%s3 + $0x4c] sm:$0xf] %vm1192, %v1162
  %1213 = vst.msk [vmem:[%s3 + $0x50] sm:$0xf] %vm1192, %v1163
  %1214 = vst.msk [vmem:[%s3 + $0x54] sm:$0xf] %vm1192, %v1164
  %1215 = vst.msk [vmem:[%s3 + $0x58] sm:$0xf] %vm1192, %v1165
  %1216 = vst.msk [vmem:[%s3 + $0x5c] sm:$0xf] %vm1192, %v1166
  %1217 = vst.msk [vmem:[%s3 + $0x60] sm:$0xf] %vm1192, %v1167
  %1218 = vst.msk [vmem:[%s3 + $0x64] sm:$0xf] %vm1192, %v1168
  %1219 = vst.msk [vmem:[%s3 + $0x68] sm:$0xf] %vm1192, %v1169
  %1220 = vst.msk [vmem:[%s3 + $0x6c] sm:$0xf] %vm1192, %v1170
  %1221 = vst.msk [vmem:[%s3 + $0x70] sm:$0xf] %vm1192, %v1171
  %1222 = vst.msk [vmem:[%s3 + $0x74] sm:$0xf] %vm1192, %v1172
  %1223 = vst.msk [vmem:[%s3 + $0x78] sm:$0xf] %vm1192, %v1173
  %1224 = vst.msk [vmem:[%s3 + $0x7c] sm:$0xf] %vm1192, %v1174
  %1225 = vst.msk [vmem:[%s3 + $0x80] sm:$0xf] %vm1192, %v1175
  %1226 = vst.msk [vmem:[%s3 + $0x84] sm:$0xf] %vm1192, %v1176
  %1227 = vst.msk [vmem:[%s3 + $0x88] sm:$0xf] %vm1192, %v1177
  %1228 = vst.msk [vmem:[%s3 + $0x8c] sm:$0xf] %vm1192, %v1178
  %1229 = vst.msk [vmem:[%s3 + $0x90] sm:$0xf] %vm1192, %v1179
  %1230 = vst.msk [vmem:[%s3 + $0x94] sm:$0xf] %vm1192, %v1180
  %1231 = vst.msk [vmem:[%s3 + $0x98] sm:$0xf] %vm1192, %v1181
  %1232 = vst.msk [vmem:[%s3 + $0x9c] sm:$0xf] %vm1192, %v1182
  %1233 = vst.msk [vmem:[%s3 + $0xa0] sm:$0xf] %vm1192, %v1183
  %1234 = vst.msk [vmem:[%s3 + $0xa4] sm:$0xf] %vm1192, %v1184
  %1235 = vst.msk [vmem:[%s3 + $0xa8] sm:$0xf] %vm1192, %v1185
  %1236 = vst.msk [vmem:[%s3 + $0xac] sm:$0xf] %vm1192, %v1186
  %1237 = vst.msk [vmem:[%s3 + $0xb0] sm:$0xf] %vm1192, %v1187
  %1238 = vst.msk [vmem:[%s3 + $0xb4] sm:$0xf] %vm1192, %v1188
  %1239 = vst.msk [vmem:[%s3 + $0xb8] sm:$0xf] %vm1192, %v1189
  %1240 = vst.msk [vmem:[%s3 + $0xbc] sm:$0xf] %vm1192, %v1190
  %1241 = vst.msk [vmem:[%s3 + $0xc0] sm:$0xf] %vm1192, %v1191
  // Predicated region
  $region14: #{simple_cnn_forward.2} parent=0 // pred_check
    _
  $region15: #{simple_cnn_forward.2} parent=0 // pred_check_branch
    %1243 = sbr.rel (0) target = $region17
  $region16: #{simple_cnn_forward.2} parent=0 // pred_region
    _
  $region17: #{simple_cnn_forward.2} parent=0 // pred_fallthru
    _
  // Predicated region
  $region18: #{simple_cnn_forward.2} parent=0 // pred_check
    _
  $region19: #{simple_cnn_forward.2} parent=0 // pred_check_branch
    %1245 = sbr.rel (0) target = $region21
  $region20: #{simple_cnn_forward.2} parent=0 // pred_region
    _
  $region21: #{simple_cnn_forward.2} parent=0 // pred_fallthru
    _

</llo_original>
